<compile_context>
chip_gen: v7x
topology: tpu7x:2x2x1
jax: 0.10.0
libtpu: 0.0.40
codegen_flags: <defaults>
</compile_context>

<pallas_src>
import functools
import math

import jax
import jax.numpy as jnp
from jax import lax
from jax.experimental import pallas as pl
from jax.experimental.pallas import tpu as pltpu


def _encoder_kernel(x_ref, pe_ref, wq_ref, wk_ref, wv_ref, bq_ref, bk_ref, bv_ref,
                    wo_ref, bo_ref, ln_g_ref, ln_b_ref, w1_ref, b1_ref, w2_ref,
                    b2_ref, o_ref, *, num_heads, seq_len, block_b, x_scale,
                    neg_slope, eps):
    # x_ref: (block_b * S, E) rows, batch-major; all parameters are full VMEM blocks.
    x = x_ref[...].astype(jnp.float32)                                # (R, E)
    R, E = x.shape
    Dh = E // num_heads

    # --- scale + positional encoding (dropout = identity in eval mode) ----------
    x = x * x_scale + pe_ref[...].astype(jnp.float32)                 # pe pre-tiled to (R, E)

    # --- Q/K/V projections: one big matmul each over all rows in the block ------
    q = jnp.dot(x, wq_ref[...], preferred_element_type=jnp.float32) + bq_ref[...]
    k = jnp.dot(x, wk_ref[...], preferred_element_type=jnp.float32) + bk_ref[...]
    v = jnp.dot(x, wv_ref[...], preferred_element_type=jnp.float32) + bv_ref[...]
    wo = wo_ref[...]                                                   # (E, E) (in, out)

    inv_sqrt_dh = 1.0 / math.sqrt(Dh)
    blocks = []
    for bb in range(block_b):                                          # static, unrolled
        rows = slice(bb * seq_len, (bb + 1) * seq_len)
        acc_b = jnp.zeros((seq_len, E), jnp.float32)
        for h in range(num_heads):                                     # static, unrolled
            cols = slice(h * Dh, (h + 1) * Dh)
            qh = q[rows, cols] * inv_sqrt_dh                           # (S, Dh)
            kh = k[rows, cols]
            vh = v[rows, cols]
            # q @ k^T via contraction dims — no explicit transpose
            s = lax.dot_general(qh, kh, (((1,), (1,)), ((), ())),
                                preferred_element_type=jnp.float32)    # (S, S)
            s = s - jnp.max(s, axis=-1, keepdims=True)
            p = jnp.exp(s)
            p = p * pl.reciprocal(jnp.sum(p, axis=-1, keepdims=True), approx=False)
            ctx = jnp.dot(p, vh, preferred_element_type=jnp.float32)   # (S, Dh)
            # head merge fused into the output projection (no lane concatenate)
            acc_b = acc_b + jnp.dot(ctx, wo[cols, :],
                                    preferred_element_type=jnp.float32)
        blocks.append(acc_b)
    attn_out = blocks[0] if block_b == 1 else jnp.concatenate(blocks, axis=0)
    attn_out = attn_out + bo_ref[...]

    ln_g = ln_g_ref[...]
    ln_b = ln_b_ref[...]

    def layer_norm(y):
        mu = jnp.mean(y, axis=-1, keepdims=True)
        var = jnp.mean(jnp.square(y - mu), axis=-1, keepdims=True)
        return (y - mu) * lax.rsqrt(var + eps) * ln_g + ln_b

    src = layer_norm(x + attn_out)

    # --- feed-forward (single big matmuls over all rows) ------------------------
    h1 = jnp.dot(src, w1_ref[...], preferred_element_type=jnp.float32) + b1_ref[...]
    # nn.LeakyReLU(True): first positional arg is negative_slope, True == 1.0 (identity)
    h1 = jnp.where(h1 >= 0.0, h1, neg_slope * h1)
    ff = jnp.dot(h1, w2_ref[...], preferred_element_type=jnp.float32) + b2_ref[...]

    o_ref[...] = layer_norm(src + ff).astype(o_ref.dtype)


def _positional_encoding_table(max_len, d_model):
    """Matches PositionalEncoding: pe[t, d] = sin(t*w_d) + cos(t*w_d) for EVERY d."""
    position = jnp.arange(max_len, dtype=jnp.float32)[:, None]
    div_term = jnp.exp(jnp.arange(d_model, dtype=jnp.float32)
                       * (-math.log(10000.0) / d_model))
    ang = position * div_term
    return jnp.sin(ang) + jnp.cos(ang)                                 # (max_len, d_model)


def _pick_block_b(B, S, E):
    """Largest layout-legal divisor of B to process per grid step (capped unroll/VMEM)."""
    vmem_cap_rows_bytes = 2 * 1024 * 1024
    cap = max(1, vmem_cap_rows_bytes // max(1, S * E * 4))
    valid = [d for d in range(1, B + 1)
             if B % d == 0 and d <= 8 and d <= cap
             and ((d * S) % 8 == 0 or d == B)]
    if not valid:
        return B                        # full-batch block: always (8,128)-legal
    pref = [d for d in valid if B // d >= 2] or valid   # keep >=2 grid steps if possible
    return max(pref)


def transformer_encoder1_forward(x, params, *, num_heads, n_window=100, pos=0,
                                 block_b=None):
    """Pallas forward of Transformer_encoder1.  x: (S, B, E) -> (S, B, E)."""
    S, B, E = x.shape
    assert E % num_heads == 0 and S <= n_window

    if block_b is None:
        block_b = _pick_block_b(B, S, E)
    assert B % block_b == 0
    num_blocks = B // block_b

    # ---- host-side glue: PE table and weight re-layout (plain JAX) -------------
    pe = _positional_encoding_table(n_window, E)[pos:pos + S]          # (S, E)
    pe_tiled = jnp.tile(pe, (block_b, 1))                              # (block_b*S, E)

    wq, wk, wv = jnp.split(params["in_proj_weight"], 3, axis=0)        # (E, E) each
    bq, bk, bv = jnp.split(params["in_proj_bias"], 3, axis=0)          # (E,) each
    row = lambda v: v.reshape(1, -1)

    # batch-major row layout: rows [i*S:(i+1)*S] belong to batch element i
    x_flat = jnp.transpose(x, (1, 0, 2)).reshape(B * S, E)

    operands = [
        x_flat,                               # (B*S, E)
        pe_tiled,                             # (block_b*S, E)
        wq.T, wk.T, wv.T,                     # (E, E)  (in, out)
        row(bq), row(bk), row(bv),            # (1, E)
        params["out_proj_weight"].T,          # (E, E)  (in, out)
        row(params["out_proj_bias"]),         # (1, E)
        row(params["ln_weight"]),             # (1, E)
        row(params["ln_bias"]),               # (1, E)
        params["linear1_weight"].T,           # (E, F)
        row(params["linear1_bias"]),          # (1, F)
        params["linear2_weight"].T,           # (F, E)
        row(params["linear2_bias"]),          # (1, E)
    ]

    kernel = functools.partial(
        _encoder_kernel, num_heads=num_heads, seq_len=S, block_b=block_b,
        x_scale=math.sqrt(E), neg_slope=1.0, eps=1e-5)

    def _full(a):  # whole array resident in VMEM, same block every grid step
        return pl.BlockSpec(a.shape, lambda b, n=a.ndim: (0,) * n)

    y_flat = pl.pallas_call(
        kernel,
        out_shape=jax.ShapeDtypeStruct((B * S, E), x.dtype),
        grid=(num_blocks,),
        in_specs=[pl.BlockSpec((block_b * S, E), lambda b: (b, 0))]
                 + [_full(a) for a in operands[1:]],
        out_specs=pl.BlockSpec((block_b * S, E), lambda b: (b, 0)),
        compiler_params=pltpu.CompilerParams(
            dimension_semantics=("parallel",)),
    )(*operands)

    return jnp.transpose(y_flat.reshape(B, S, E), (1, 0, 2))           # (S, B, E)


def _reference(x, params, *, num_heads, n_window=100, pos=0):
    """Pure-JAX reference matching the PyTorch module (eval mode)."""
    S, B, E = x.shape
    H, Dh = num_heads, E // num_heads
    hp = lax.Precision.HIGHEST

    pe = _positional_encoding_table(n_window, E)[pos:pos + S]
    x = x * math.sqrt(E) + pe[:, None, :]

    wq, wk, wv = jnp.split(params["in_proj_weight"], 3, axis=0)
    bq, bk, bv = jnp.split(params["in_proj_bias"], 3, axis=0)
    q = jnp.einsum("sbe,fe->sbf", x, wq, precision=hp) + bq
    k = jnp.einsum("sbe,fe->sbf", x, wk, precision=hp) + bk
    v = jnp.einsum("sbe,fe->sbf", x, wv, precision=hp) + bv

    def heads(t):                                     # (S,B,E) -> (B,H,S,Dh)
        return jnp.transpose(t.reshape(S, B, H, Dh), (1, 2, 0, 3))

    sc = jnp.einsum("bhsd,bhtd->bhst", heads(q), heads(k),
                    precision=hp) / math.sqrt(Dh)
    attn = jax.nn.softmax(sc, axis=-1)
    ctx = jnp.einsum("bhst,bhtd->bhsd", attn, heads(v), precision=hp)
    ctx = jnp.transpose(ctx, (2, 0, 1, 3)).reshape(S, B, E)
    a = jnp.einsum("sbe,fe->sbf", ctx, params["out_proj_weight"],
                   precision=hp) + params["out_proj_bias"]

    def layer_norm(y):
        mu = jnp.mean(y, -1, keepdims=True)
        var = jnp.mean((y - mu) ** 2, -1, keepdims=True)
        return (y - mu) / jnp.sqrt(var + 1e-5) * params["ln_weight"] + params["ln_bias"]

    src = layer_norm(x + a)
    h1 = jnp.einsum("sbe,fe->sbf", src, params["linear1_weight"],
                    precision=hp) + params["linear1_bias"]
    h1 = jnp.where(h1 >= 0.0, h1, 1.0 * h1)           # LeakyReLU(negative_slope=True)
    ff = jnp.einsum("sbf,ef->sbe", h1, params["linear2_weight"],
                    precision=hp) + params["linear2_bias"]
    return layer_norm(src + ff)


if __name__ == "__main__":
    # Small shapes consistent with the module: seq-first (S, B, E), S <= n_window=100.
    S, B, E, H = 8, 2, 16, 2
    F = 16                                    # dim_feedforward is fixed to 16 in the module

    key = jax.random.PRNGKey(0)
    ks = jax.random.split(key, 9)
    x = jax.random.normal(ks[0], (S, B, E), jnp.float32)

    def uni(k, shape, fan_in):
        bnd = 1.0 / math.sqrt(fan_in)
        return jax.random.uniform(k, shape, jnp.float32, -bnd, bnd)

    params = {
        "in_proj_weight":  uni(ks[1], (3 * E, E), E),   # nn.MultiheadAttention packed QKV
        "in_proj_bias":    uni(ks[2], (3 * E,), E),
        "out_proj_weight": uni(ks[3], (E, E), E),
        "out_proj_bias":   uni(ks[4], (E,), E),
        "linear1_weight":  uni(ks[5], (F, E), E),       # nn.Linear(E, 16)
        "linear1_bias":    uni(ks[6], (F,), E),
        "linear2_weight":  uni(ks[7], (E, F), F),       # nn.Linear(16, E)
        "linear2_bias":    uni(ks[8], (E,), F),
        "ln_weight": jnp.ones((E,), jnp.float32),       # shared nn.LayerNorm(E)
        "ln_bias":   jnp.zeros((E,), jnp.float32),
    }

    y = transformer_encoder1_forward(x, params, num_heads=H)
    y = jax.block_until_ready(y)

    y_ref = _reference(x, params, num_heads=H)
    assert y.shape == y_ref.shape == (S, B, E), (y.shape, y_ref.shape)
    max_err = float(jnp.max(jnp.abs(y - y_ref)))
    assert jnp.allclose(y, y_ref, atol=1e-4, rtol=1e-4), max_err
    print("KERNEL_OK")
</pallas_src>

<mosaic_0001>
module attributes {stable_mosaic.version = 11 : i64} {
  func.func @_encoder_kernel(%arg0: i32, %arg1: memref<8x16xf32, #tpu.memory_space<vmem>>, %arg2: memref<8x16xf32, #tpu.memory_space<vmem>>, %arg3: memref<16x16xf32, #tpu.memory_space<vmem>>, %arg4: memref<16x16xf32, #tpu.memory_space<vmem>>, %arg5: memref<16x16xf32, #tpu.memory_space<vmem>>, %arg6: memref<1x16xf32, #tpu.memory_space<vmem>>, %arg7: memref<1x16xf32, #tpu.memory_space<vmem>>, %arg8: memref<1x16xf32, #tpu.memory_space<vmem>>, %arg9: memref<16x16xf32, #tpu.memory_space<vmem>>, %arg10: memref<1x16xf32, #tpu.memory_space<vmem>>, %arg11: memref<1x16xf32, #tpu.memory_space<vmem>>, %arg12: memref<1x16xf32, #tpu.memory_space<vmem>>, %arg13: memref<16x16xf32, #tpu.memory_space<vmem>>, %arg14: memref<1x16xf32, #tpu.memory_space<vmem>>, %arg15: memref<16x16xf32, #tpu.memory_space<vmem>>, %arg16: memref<1x16xf32, #tpu.memory_space<vmem>>, %arg17: memref<8x16xf32, #tpu.memory_space<vmem>>) attributes {dimension_semantics = [#tpu.dimension_semantics<parallel>], iteration_bounds = array<i64: 2>, scalar_prefetch = 0 : i64, scratch_operands = 0 : i64, tpu.core_type = #tpu.core_type<tc>, window_params = [{transform_indices = @transform_0, window_bounds = array<i64: 8, 16>}, {pipeline_mode = #tpu.pipeline_mode<synchronous>, transform_indices = @transform_1, window_bounds = array<i64: 8, 16>}, {pipeline_mode = #tpu.pipeline_mode<synchronous>, transform_indices = @transform_2, window_bounds = array<i64: 16, 16>}, {pipeline_mode = #tpu.pipeline_mode<synchronous>, transform_indices = @transform_3, window_bounds = array<i64: 16, 16>}, {pipeline_mode = #tpu.pipeline_mode<synchronous>, transform_indices = @transform_4, window_bounds = array<i64: 16, 16>}, {pipeline_mode = #tpu.pipeline_mode<synchronous>, transform_indices = @transform_5, window_bounds = array<i64: 1, 16>}, {pipeline_mode = #tpu.pipeline_mode<synchronous>, transform_indices = @transform_6, window_bounds = array<i64: 1, 16>}, {pipeline_mode = #tpu.pipeline_mode<synchronous>, transform_indices = @transform_7, window_bounds = array<i64: 1, 16>}, {pipeline_mode = #tpu.pipeline_mode<synchronous>, transform_indices = @transform_8, window_bounds = array<i64: 16, 16>}, {pipeline_mode = #tpu.pipeline_mode<synchronous>, transform_indices = @transform_9, window_bounds = array<i64: 1, 16>}, {pipeline_mode = #tpu.pipeline_mode<synchronous>, transform_indices = @transform_10, window_bounds = array<i64: 1, 16>}, {pipeline_mode = #tpu.pipeline_mode<synchronous>, transform_indices = @transform_11, window_bounds = array<i64: 1, 16>}, {pipeline_mode = #tpu.pipeline_mode<synchronous>, transform_indices = @transform_12, window_bounds = array<i64: 16, 16>}, {pipeline_mode = #tpu.pipeline_mode<synchronous>, transform_indices = @transform_13, window_bounds = array<i64: 1, 16>}, {pipeline_mode = #tpu.pipeline_mode<synchronous>, transform_indices = @transform_14, window_bounds = array<i64: 16, 16>}, {pipeline_mode = #tpu.pipeline_mode<synchronous>, transform_indices = @transform_15, window_bounds = array<i64: 1, 16>}, {transform_indices = @transform_16, window_bounds = array<i64: 8, 16>}]} {
    %c0 = arith.constant 0 : index
    %c0_0 = arith.constant 0 : index
    %0 = vector.load %arg1[%c0, %c0_0] : memref<8x16xf32, #tpu.memory_space<vmem>>, vector<8x16xf32>
    %cst = arith.constant 4.000000e+00 : f32
    %1 = vector.broadcast %cst : f32 to vector<8x16xf32>
    %2 = arith.mulf %0, %1 : vector<8x16xf32>
    %c0_1 = arith.constant 0 : index
    %c0_2 = arith.constant 0 : index
    %3 = vector.load %arg2[%c0_1, %c0_2] : memref<8x16xf32, #tpu.memory_space<vmem>>, vector<8x16xf32>
    %4 = arith.addf %2, %3 : vector<8x16xf32>
    %c0_3 = arith.constant 0 : index
    %c0_4 = arith.constant 0 : index
    %5 = vector.load %arg3[%c0_3, %c0_4] : memref<16x16xf32, #tpu.memory_space<vmem>>, vector<16x16xf32>
    %cst_5 = arith.constant dense<0.000000e+00> : vector<8x16xf32>
    %6 = tpu.matmul %4, %5, %cst_5 {dimension_numbers = #tpu.dot_dimension_numbers<[1], [0], [0], [1], [0, 0, 1, 1], [], []>} : vector<8x16xf32>, vector<16x16xf32>, vector<8x16xf32> -> vector<8x16xf32>
    %c0_6 = arith.constant 0 : index
    %c0_7 = arith.constant 0 : index
    %7 = vector.load %arg6[%c0_6, %c0_7] : memref<1x16xf32, #tpu.memory_space<vmem>>, vector<1x16xf32>
    %8 = vector.broadcast %7 : vector<1x16xf32> to vector<8x16xf32>
    %9 = arith.addf %6, %8 : vector<8x16xf32>
    %c0_8 = arith.constant 0 : index
    %c0_9 = arith.constant 0 : index
    %10 = vector.load %arg4[%c0_8, %c0_9] : memref<16x16xf32, #tpu.memory_space<vmem>>, vector<16x16xf32>
    %cst_10 = arith.constant dense<0.000000e+00> : vector<8x16xf32>
    %11 = tpu.matmul %4, %10, %cst_10 {dimension_numbers = #tpu.dot_dimension_numbers<[1], [0], [0], [1], [0, 0, 1, 1], [], []>} : vector<8x16xf32>, vector<16x16xf32>, vector<8x16xf32> -> vector<8x16xf32>
    %c0_11 = arith.constant 0 : index
    %c0_12 = arith.constant 0 : index
    %12 = vector.load %arg7[%c0_11, %c0_12] : memref<1x16xf32, #tpu.memory_space<vmem>>, vector<1x16xf32>
    %13 = vector.broadcast %12 : vector<1x16xf32> to vector<8x16xf32>
    %14 = arith.addf %11, %13 : vector<8x16xf32>
    %c0_13 = arith.constant 0 : index
    %c0_14 = arith.constant 0 : index
    %15 = vector.load %arg5[%c0_13, %c0_14] : memref<16x16xf32, #tpu.memory_space<vmem>>, vector<16x16xf32>
    %cst_15 = arith.constant dense<0.000000e+00> : vector<8x16xf32>
    %16 = tpu.matmul %4, %15, %cst_15 {dimension_numbers = #tpu.dot_dimension_numbers<[1], [0], [0], [1], [0, 0, 1, 1], [], []>} : vector<8x16xf32>, vector<16x16xf32>, vector<8x16xf32> -> vector<8x16xf32>
    %c0_16 = arith.constant 0 : index
    %c0_17 = arith.constant 0 : index
    %17 = vector.load %arg8[%c0_16, %c0_17] : memref<1x16xf32, #tpu.memory_space<vmem>>, vector<1x16xf32>
    %18 = vector.broadcast %17 : vector<1x16xf32> to vector<8x16xf32>
    %19 = arith.addf %16, %18 : vector<8x16xf32>
    %c0_18 = arith.constant 0 : index
    %c0_19 = arith.constant 0 : index
    %20 = vector.load %arg9[%c0_18, %c0_19] : memref<16x16xf32, #tpu.memory_space<vmem>>, vector<16x16xf32>
    %cst_20 = arith.constant 0.000000e+00 : f32
    %21 = vector.broadcast %cst_20 : f32 to vector<8x16xf32>
    %22 = vector.extract_strided_slice %9 {offsets = [0, 0], sizes = [8, 8], strides = [1, 1]} : vector<8x16xf32> to vector<8x8xf32>
    %cst_21 = arith.constant 0.353553385 : f32
    %23 = vector.broadcast %cst_21 : f32 to vector<8x8xf32>
    %24 = arith.mulf %22, %23 : vector<8x8xf32>
    %25 = vector.extract_strided_slice %14 {offsets = [0, 0], sizes = [8, 8], strides = [1, 1]} : vector<8x16xf32> to vector<8x8xf32>
    %26 = vector.extract_strided_slice %19 {offsets = [0, 0], sizes = [8, 8], strides = [1, 1]} : vector<8x16xf32> to vector<8x8xf32>
    %cst_22 = arith.constant dense<0.000000e+00> : vector<8x8xf32>
    %27 = tpu.matmul %24, %25, %cst_22 {dimension_numbers = #tpu.dot_dimension_numbers<[1], [1], [0], [0], [0, 0, 1, 0], [], []>} : vector<8x8xf32>, vector<8x8xf32>, vector<8x8xf32> -> vector<8x8xf32>
    %cst_23 = arith.constant dense<0xFF800000> : vector<8xf32>
    %28 = vector.multi_reduction <maximumf>, %27, %cst_23 [1] : vector<8x8xf32> to vector<8xf32>
    %29 = vector.shape_cast %28 : vector<8xf32> to vector<8x1xf32>
    %30 = vector.broadcast %29 : vector<8x1xf32> to vector<8x8xf32>
    %31 = arith.subf %27, %30 : vector<8x8xf32>
    %32 = math.exp %31 : vector<8x8xf32>
    %cst_24 = arith.constant dense<0.000000e+00> : vector<8xf32>
    %33 = vector.multi_reduction <add>, %32, %cst_24 [1] : vector<8x8xf32> to vector<8xf32>
    %34 = vector.shape_cast %33 : vector<8xf32> to vector<8x1xf32>
    %35 = tpu.reciprocal %34 : vector<8x1xf32> -> vector<8x1xf32>
    %36 = vector.broadcast %35 : vector<8x1xf32> to vector<8x8xf32>
    %37 = arith.mulf %32, %36 : vector<8x8xf32>
    %cst_25 = arith.constant dense<0.000000e+00> : vector<8x8xf32>
    %38 = tpu.matmul %37, %26, %cst_25 {dimension_numbers = #tpu.dot_dimension_numbers<[1], [0], [0], [1], [0, 0, 1, 1], [], []>} : vector<8x8xf32>, vector<8x8xf32>, vector<8x8xf32> -> vector<8x8xf32>
    %39 = vector.extract_strided_slice %20 {offsets = [0, 0], sizes = [8, 16], strides = [1, 1]} : vector<16x16xf32> to vector<8x16xf32>
    %cst_26 = arith.constant dense<0.000000e+00> : vector<8x16xf32>
    %40 = tpu.matmul %38, %39, %cst_26 {dimension_numbers = #tpu.dot_dimension_numbers<[1], [0], [0], [1], [0, 0, 1, 1], [], []>} : vector<8x8xf32>, vector<8x16xf32>, vector<8x16xf32> -> vector<8x16xf32>
    %41 = arith.addf %21, %40 : vector<8x16xf32>
    %42 = vector.extract_strided_slice %9 {offsets = [0, 8], sizes = [8, 8], strides = [1, 1]} : vector<8x16xf32> to vector<8x8xf32>
    %cst_27 = arith.constant 0.353553385 : f32
    %43 = vector.broadcast %cst_27 : f32 to vector<8x8xf32>
    %44 = arith.mulf %42, %43 : vector<8x8xf32>
    %45 = vector.extract_strided_slice %14 {offsets = [0, 8], sizes = [8, 8], strides = [1, 1]} : vector<8x16xf32> to vector<8x8xf32>
    %46 = vector.extract_strided_slice %19 {offsets = [0, 8], sizes = [8, 8], strides = [1, 1]} : vector<8x16xf32> to vector<8x8xf32>
    %cst_28 = arith.constant dense<0.000000e+00> : vector<8x8xf32>
    %47 = tpu.matmul %44, %45, %cst_28 {dimension_numbers = #tpu.dot_dimension_numbers<[1], [1], [0], [0], [0, 0, 1, 0], [], []>} : vector<8x8xf32>, vector<8x8xf32>, vector<8x8xf32> -> vector<8x8xf32>
    %cst_29 = arith.constant dense<0xFF800000> : vector<8xf32>
    %48 = vector.multi_reduction <maximumf>, %47, %cst_29 [1] : vector<8x8xf32> to vector<8xf32>
    %49 = vector.shape_cast %48 : vector<8xf32> to vector<8x1xf32>
    %50 = vector.broadcast %49 : vector<8x1xf32> to vector<8x8xf32>
    %51 = arith.subf %47, %50 : vector<8x8xf32>
    %52 = math.exp %51 : vector<8x8xf32>
    %cst_30 = arith.constant dense<0.000000e+00> : vector<8xf32>
    %53 = vector.multi_reduction <add>, %52, %cst_30 [1] : vector<8x8xf32> to vector<8xf32>
    %54 = vector.shape_cast %53 : vector<8xf32> to vector<8x1xf32>
    %55 = tpu.reciprocal %54 : vector<8x1xf32> -> vector<8x1xf32>
    %56 = vector.broadcast %55 : vector<8x1xf32> to vector<8x8xf32>
    %57 = arith.mulf %52, %56 : vector<8x8xf32>
    %cst_31 = arith.constant dense<0.000000e+00> : vector<8x8xf32>
    %58 = tpu.matmul %57, %46, %cst_31 {dimension_numbers = #tpu.dot_dimension_numbers<[1], [0], [0], [1], [0, 0, 1, 1], [], []>} : vector<8x8xf32>, vector<8x8xf32>, vector<8x8xf32> -> vector<8x8xf32>
    %59 = vector.extract_strided_slice %20 {offsets = [8, 0], sizes = [8, 16], strides = [1, 1]} : vector<16x16xf32> to vector<8x16xf32>
    %cst_32 = arith.constant dense<0.000000e+00> : vector<8x16xf32>
    %60 = tpu.matmul %58, %59, %cst_32 {dimension_numbers = #tpu.dot_dimension_numbers<[1], [0], [0], [1], [0, 0, 1, 1], [], []>} : vector<8x8xf32>, vector<8x16xf32>, vector<8x16xf32> -> vector<8x16xf32>
    %61 = arith.addf %41, %60 : vector<8x16xf32>
    %c0_33 = arith.constant 0 : index
    %c0_34 = arith.constant 0 : index
    %62 = vector.load %arg10[%c0_33, %c0_34] : memref<1x16xf32, #tpu.memory_space<vmem>>, vector<1x16xf32>
    %63 = vector.broadcast %62 : vector<1x16xf32> to vector<8x16xf32>
    %64 = arith.addf %61, %63 : vector<8x16xf32>
    %c0_35 = arith.constant 0 : index
    %c0_36 = arith.constant 0 : index
    %65 = vector.load %arg11[%c0_35, %c0_36] : memref<1x16xf32, #tpu.memory_space<vmem>>, vector<1x16xf32>
    %c0_37 = arith.constant 0 : index
    %c0_38 = arith.constant 0 : index
    %66 = vector.load %arg12[%c0_37, %c0_38] : memref<1x16xf32, #tpu.memory_space<vmem>>, vector<1x16xf32>
    %67 = arith.addf %4, %64 : vector<8x16xf32>
    %cst_39 = arith.constant dense<0.000000e+00> : vector<8xf32>
    %68 = vector.multi_reduction <add>, %67, %cst_39 [1] : vector<8x16xf32> to vector<8xf32>
    %69 = vector.shape_cast %68 : vector<8xf32> to vector<8x1xf32>
    %cst_40 = arith.constant 1.600000e+01 : f32
    %70 = vector.broadcast %cst_40 : f32 to vector<8x1xf32>
    %71 = arith.divf %69, %70 : vector<8x1xf32>
    %72 = vector.broadcast %71 : vector<8x1xf32> to vector<8x16xf32>
    %73 = arith.subf %67, %72 : vector<8x16xf32>
    %74 = arith.mulf %73, %73 : vector<8x16xf32>
    %cst_41 = arith.constant dense<0.000000e+00> : vector<8xf32>
    %75 = vector.multi_reduction <add>, %74, %cst_41 [1] : vector<8x16xf32> to vector<8xf32>
    %76 = vector.shape_cast %75 : vector<8xf32> to vector<8x1xf32>
    %cst_42 = arith.constant 1.600000e+01 : f32
    %77 = vector.broadcast %cst_42 : f32 to vector<8x1xf32>
    %78 = arith.divf %76, %77 : vector<8x1xf32>
    %79 = vector.broadcast %71 : vector<8x1xf32> to vector<8x16xf32>
    %80 = arith.subf %67, %79 : vector<8x16xf32>
    %cst_43 = arith.constant 9.99999974E-6 : f32
    %81 = vector.broadcast %cst_43 : f32 to vector<8x1xf32>
    %82 = arith.addf %78, %81 : vector<8x1xf32>
    %83 = math.rsqrt %82 : vector<8x1xf32>
    %84 = vector.broadcast %83 : vector<8x1xf32> to vector<8x16xf32>
    %85 = arith.mulf %80, %84 : vector<8x16xf32>
    %86 = vector.broadcast %65 : vector<1x16xf32> to vector<8x16xf32>
    %87 = arith.mulf %85, %86 : vector<8x16xf32>
    %88 = vector.broadcast %66 : vector<1x16xf32> to vector<8x16xf32>
    %89 = arith.addf %87, %88 : vector<8x16xf32>
    %c0_44 = arith.constant 0 : index
    %c0_45 = arith.constant 0 : index
    %90 = vector.load %arg13[%c0_44, %c0_45] : memref<16x16xf32, #tpu.memory_space<vmem>>, vector<16x16xf32>
    %cst_46 = arith.constant dense<0.000000e+00> : vector<8x16xf32>
    %91 = tpu.matmul %89, %90, %cst_46 {dimension_numbers = #tpu.dot_dimension_numbers<[1], [0], [0], [1], [0, 0, 1, 1], [], []>} : vector<8x16xf32>, vector<16x16xf32>, vector<8x16xf32> -> vector<8x16xf32>
    %c0_47 = arith.constant 0 : index
    %c0_48 = arith.constant 0 : index
    %92 = vector.load %arg14[%c0_47, %c0_48] : memref<1x16xf32, #tpu.memory_space<vmem>>, vector<1x16xf32>
    %93 = vector.broadcast %92 : vector<1x16xf32> to vector<8x16xf32>
    %94 = arith.addf %91, %93 : vector<8x16xf32>
    %cst_49 = arith.constant 0.000000e+00 : f32
    %95 = vector.broadcast %cst_49 : f32 to vector<8x16xf32>
    %96 = arith.cmpf oge, %94, %95 : vector<8x16xf32>
    %cst_50 = arith.constant 1.000000e+00 : f32
    %97 = vector.broadcast %cst_50 : f32 to vector<8x16xf32>
    %98 = arith.mulf %97, %94 : vector<8x16xf32>
    %99 = arith.select %96, %94, %98 : vector<8x16xi1>, vector<8x16xf32>
    %c0_51 = arith.constant 0 : index
    %c0_52 = arith.constant 0 : index
    %100 = vector.load %arg15[%c0_51, %c0_52] : memref<16x16xf32, #tpu.memory_space<vmem>>, vector<16x16xf32>
    %cst_53 = arith.constant dense<0.000000e+00> : vector<8x16xf32>
    %101 = tpu.matmul %99, %100, %cst_53 {dimension_numbers = #tpu.dot_dimension_numbers<[1], [0], [0], [1], [0, 0, 1, 1], [], []>} : vector<8x16xf32>, vector<16x16xf32>, vector<8x16xf32> -> vector<8x16xf32>
    %c0_54 = arith.constant 0 : index
    %c0_55 = arith.constant 0 : index
    %102 = vector.load %arg16[%c0_54, %c0_55] : memref<1x16xf32, #tpu.memory_space<vmem>>, vector<1x16xf32>
    %103 = vector.broadcast %102 : vector<1x16xf32> to vector<8x16xf32>
    %104 = arith.addf %101, %103 : vector<8x16xf32>
    %105 = arith.addf %89, %104 : vector<8x16xf32>
    %cst_56 = arith.constant dense<0.000000e+00> : vector<8xf32>
    %106 = vector.multi_reduction <add>, %105, %cst_56 [1] : vector<8x16xf32> to vector<8xf32>
    %107 = vector.shape_cast %106 : vector<8xf32> to vector<8x1xf32>
    %cst_57 = arith.constant 1.600000e+01 : f32
    %108 = vector.broadcast %cst_57 : f32 to vector<8x1xf32>
    %109 = arith.divf %107, %108 : vector<8x1xf32>
    %110 = vector.broadcast %109 : vector<8x1xf32> to vector<8x16xf32>
    %111 = arith.subf %105, %110 : vector<8x16xf32>
    %112 = arith.mulf %111, %111 : vector<8x16xf32>
    %cst_58 = arith.constant dense<0.000000e+00> : vector<8xf32>
    %113 = vector.multi_reduction <add>, %112, %cst_58 [1] : vector<8x16xf32> to vector<8xf32>
    %114 = vector.shape_cast %113 : vector<8xf32> to vector<8x1xf32>
    %cst_59 = arith.constant 1.600000e+01 : f32
    %115 = vector.broadcast %cst_59 : f32 to vector<8x1xf32>
    %116 = arith.divf %114, %115 : vector<8x1xf32>
    %117 = vector.broadcast %109 : vector<8x1xf32> to vector<8x16xf32>
    %118 = arith.subf %105, %117 : vector<8x16xf32>
    %cst_60 = arith.constant 9.99999974E-6 : f32
    %119 = vector.broadcast %cst_60 : f32 to vector<8x1xf32>
    %120 = arith.addf %116, %119 : vector<8x1xf32>
    %121 = math.rsqrt %120 : vector<8x1xf32>
    %122 = vector.broadcast %121 : vector<8x1xf32> to vector<8x16xf32>
    %123 = arith.mulf %118, %122 : vector<8x16xf32>
    %124 = vector.broadcast %65 : vector<1x16xf32> to vector<8x16xf32>
    %125 = arith.mulf %123, %124 : vector<8x16xf32>
    %126 = vector.broadcast %66 : vector<1x16xf32> to vector<8x16xf32>
    %127 = arith.addf %125, %126 : vector<8x16xf32>
    %c0_61 = arith.constant 0 : index
    %c0_62 = arith.constant 0 : index
    %128 = vector.load %arg17[%c0_61, %c0_62] : memref<8x16xf32, #tpu.memory_space<vmem>>, vector<8x16xf32>
    tpu.vector_store %arg17[%c0_61, %c0_62], %127 {strides = array<i32>} : memref<8x16xf32, #tpu.memory_space<vmem>>, vector<8x16xf32>,
    return
  }
  func.func @transform_0(%arg0: i32) -> (i32, i32) {
    %c0_i32 = arith.constant 0 : i32
    %c0_i32_0 = arith.constant 0 : i32
    return %arg0, %c0_i32 : i32, i32
  }
  func.func @transform_1(%arg0: i32) -> (i32, i32) {
    %c0_i32 = arith.constant 0 : i32
    %c0_i32_0 = arith.constant 0 : i32
    %c0_i32_1 = arith.constant 0 : i32
    return %c0_i32, %c0_i32_0 : i32, i32
  }
  func.func @transform_2(%arg0: i32) -> (i32, i32) {
    %c0_i32 = arith.constant 0 : i32
    %c0_i32_0 = arith.constant 0 : i32
    %c0_i32_1 = arith.constant 0 : i32
    return %c0_i32, %c0_i32_0 : i32, i32
  }
  func.func @transform_3(%arg0: i32) -> (i32, i32) {
    %c0_i32 = arith.constant 0 : i32
    %c0_i32_0 = arith.constant 0 : i32
    %c0_i32_1 = arith.constant 0 : i32
    return %c0_i32, %c0_i32_0 : i32, i32
  }
  func.func @transform_4(%arg0: i32) -> (i32, i32) {
    %c0_i32 = arith.constant 0 : i32
    %c0_i32_0 = arith.constant 0 : i32
    %c0_i32_1 = arith.constant 0 : i32
    return %c0_i32, %c0_i32_0 : i32, i32
  }
  func.func @transform_5(%arg0: i32) -> (i32, i32) {
    %c0_i32 = arith.constant 0 : i32
    %c0_i32_0 = arith.constant 0 : i32
    %c0_i32_1 = arith.constant 0 : i32
    return %c0_i32, %c0_i32_0 : i32, i32
  }
  func.func @transform_6(%arg0: i32) -> (i32, i32) {
    %c0_i32 = arith.constant 0 : i32
    %c0_i32_0 = arith.constant 0 : i32
    %c0_i32_1 = arith.constant 0 : i32
    return %c0_i32, %c0_i32_0 : i32, i32
  }
  func.func @transform_7(%arg0: i32) -> (i32, i32) {
    %c0_i32 = arith.constant 0 : i32
    %c0_i32_0 = arith.constant 0 : i32
    %c0_i32_1 = arith.constant 0 : i32
    return %c0_i32, %c0_i32_0 : i32, i32
  }
  func.func @transform_8(%arg0: i32) -> (i32, i32) {
    %c0_i32 = arith.constant 0 : i32
    %c0_i32_0 = arith.constant 0 : i32
    %c0_i32_1 = arith.constant 0 : i32
    return %c0_i32, %c0_i32_0 : i32, i32
  }
  func.func @transform_9(%arg0: i32) -> (i32, i32) {
    %c0_i32 = arith.constant 0 : i32
    %c0_i32_0 = arith.constant 0 : i32
    %c0_i32_1 = arith.constant 0 : i32
    return %c0_i32, %c0_i32_0 : i32, i32
  }
  func.func @transform_10(%arg0: i32) -> (i32, i32) {
    %c0_i32 = arith.constant 0 : i32
    %c0_i32_0 = arith.constant 0 : i32
    %c0_i32_1 = arith.constant 0 : i32
    return %c0_i32, %c0_i32_0 : i32, i32
  }
  func.func @transform_11(%arg0: i32) -> (i32, i32) {
    %c0_i32 = arith.constant 0 : i32
    %c0_i32_0 = arith.constant 0 : i32
    %c0_i32_1 = arith.constant 0 : i32
    return %c0_i32, %c0_i32_0 : i32, i32
  }
  func.func @transform_12(%arg0: i32) -> (i32, i32) {
    %c0_i32 = arith.constant 0 : i32
    %c0_i32_0 = arith.constant 0 : i32
    %c0_i32_1 = arith.constant 0 : i32
    return %c0_i32, %c0_i32_0 : i32, i32
  }
  func.func @transform_13(%arg0: i32) -> (i32, i32) {
    %c0_i32 = arith.constant 0 : i32
    %c0_i32_0 = arith.constant 0 : i32
    %c0_i32_1 = arith.constant 0 : i32
    return %c0_i32, %c0_i32_0 : i32, i32
  }
  func.func @transform_14(%arg0: i32) -> (i32, i32) {
    %c0_i32 = arith.constant 0 : i32
    %c0_i32_0 = arith.constant 0 : i32
    %c0_i32_1 = arith.constant 0 : i32
    return %c0_i32, %c0_i32_0 : i32, i32
  }
  func.func @transform_15(%arg0: i32) -> (i32, i32) {
    %c0_i32 = arith.constant 0 : i32
    %c0_i32_0 = arith.constant 0 : i32
    %c0_i32_1 = arith.constant 0 : i32
    return %c0_i32, %c0_i32_0 : i32, i32
  }
  func.func @transform_16(%arg0: i32) -> (i32, i32) {
    %c0_i32 = arith.constant 0 : i32
    %c0_i32_0 = arith.constant 0 : i32
    return %arg0, %c0_i32 : i32, i32
  }
}

</mosaic_0001>

<llo_original>
// kernel: tpu_custom_call.1
$region0: #{tpu_custom_call.1}
  #allocation0 [shape = 'u32[]', space=smem, size = 0x4, offset = 0x4, fixed_abs, tag = 'smem constant byte address 0x4 - core index']
  #allocation1 [shape = 'u32[144,128]{1,0:T(1,128)}', space=vmem, size = 0x12000, scoped, tag = 'internal scratch']
  %s0 = inlined_call_operand.hbm [shape: f32[16,16], index: 0, kind: input, shape index: {}]
  %s1 = inlined_call_operand.hbm [shape: f32[8,16], index: 1, kind: input, shape index: {}]
  %s2 = inlined_call_operand.hbm [shape: f32[16,16], index: 2, kind: input, shape index: {}]
  %s3 = inlined_call_operand.hbm [shape: f32[16,16], index: 3, kind: input, shape index: {}]
  %s4 = inlined_call_operand.hbm [shape: f32[16,16], index: 4, kind: input, shape index: {}]
  %s5 = inlined_call_operand.vmem [shape: f32[1,16], index: 5, kind: input, shape index: {}]
  %s6 = inlined_call_operand.hbm [shape: f32[1,16], index: 6, kind: input, shape index: {}]
  %s7 = inlined_call_operand.hbm [shape: f32[1,16], index: 7, kind: input, shape index: {}]
  %s8 = inlined_call_operand.vmem [shape: f32[16,16], index: 8, kind: input, shape index: {}]
  %s9 = inlined_call_operand.hbm [shape: f32[1,16], index: 9, kind: input, shape index: {}]
  %s10 = inlined_call_operand.hbm [shape: f32[1,16], index: 10, kind: input, shape index: {}]
  %s11 = inlined_call_operand.hbm [shape: f32[1,16], index: 11, kind: input, shape index: {}]
  %s12 = inlined_call_operand.vmem [shape: f32[16,16], index: 12, kind: input, shape index: {}]
  %s13 = inlined_call_operand.hbm [shape: f32[1,16], index: 13, kind: input, shape index: {}]
  %s14 = inlined_call_operand.vmem [shape: f32[16,16], index: 14, kind: input, shape index: {}]
  %s15 = inlined_call_operand.vmem [shape: f32[1,16], index: 15, kind: input, shape index: {}]
  %s16 = inlined_call_operand.hbm [shape: f32[16,16], index: 16, kind: output, shape index: {}]
  %s17 = sld [smem:[#allocation0]]
  $region141: #{tpu_custom_call.1} parent=0
    _
  %s19 = ssub.s32 1, %s17
  %s20 = scalar_select 0, %s19, %s17
  $region1: #{tpu_custom_call.1} parent=0
    #allocation2 [shape = 'u8[8192]{0}', space=vmem, size = 0x2000, scoped, tag = 'input window, operand 0']
    #allocation3 [shape = 's32[2]{0}', space=sflag, size = 0x8, scoped, tag = 'scoped memory for tpu_custom_call.1']
    #allocation4 [shape = 's32[2]{0}', space=sflag, size = 0x8, scoped, tag = 'scoped memory for tpu_custom_call.1']
    #allocation5 [shape = 'u8[4096]{0}', space=vmem, size = 0x1000, scoped, tag = 'input window, operand 1, single buffered']
    #allocation6 [shape = 's32[1]{0}', space=sflag, size = 0x4, scoped, tag = 'scoped memory for tpu_custom_call.1']
    #allocation7 [shape = 'u8[8192]{0}', space=vmem, size = 0x2000, scoped, tag = 'input window, operand 2, single buffered']
    #allocation8 [shape = 'u8[8192]{0}', space=vmem, size = 0x2000, scoped, tag = 'input window, operand 3, single buffered']
    #allocation9 [shape = 's32[1]{0}', space=sflag, size = 0x4, scoped, tag = 'scoped memory for tpu_custom_call.1']
    #allocation10 [shape = 'u8[8192]{0}', space=vmem, size = 0x2000, scoped, tag = 'input window, operand 4, single buffered']
    #allocation11 [shape = 'u8[512]{0}', space=vmem, size = 0x400, scoped, tag = 'input window, operand 6, single buffered']
    #allocation12 [shape = 's32[1]{0}', space=sflag, size = 0x4, scoped, tag = 'scoped memory for tpu_custom_call.1']
    #allocation13 [shape = 'u8[512]{0}', space=vmem, size = 0x400, scoped, tag = 'input window, operand 7, single buffered']
    #allocation14 [shape = 'u8[512]{0}', space=vmem, size = 0x400, scoped, tag = 'input window, operand 9, single buffered']
    #allocation15 [shape = 's32[1]{0}', space=sflag, size = 0x4, scoped, tag = 'scoped memory for tpu_custom_call.1']
    #allocation16 [shape = 'u8[512]{0}', space=vmem, size = 0x400, scoped, tag = 'input window, operand 10, single buffered']
    #allocation17 [shape = 'u8[512]{0}', space=vmem, size = 0x400, scoped, tag = 'input window, operand 11, single buffered']
    #allocation18 [shape = 's32[1]{0}', space=sflag, size = 0x4, scoped, tag = 'scoped memory for tpu_custom_call.1']
    #allocation19 [shape = 'u8[512]{0}', space=vmem, size = 0x400, scoped, tag = 'input window, operand 13, single buffered']
    #allocation20 [shape = 'u8[8192]{0}', space=vmem, size = 0x2000, scoped, tag = 'output window, operand 0']
    %21 = vsyncpa [#allocation3], 0
    %s22 = scalar_lea.sflag [#allocation3], 1
    %23 = vsyncpa %s22, 0
    %24 = vsyncpa [#allocation6], 0
    %25 = vsyncpa [#allocation9], 0
    %26 = vsyncpa [#allocation12], 0
    %27 = vsyncpa [#allocation15], 0
    %28 = vsyncpa [#allocation18], 0
    %29 = vsyncpa [#allocation4], 0
    %s30 = scalar_lea.sflag [#allocation4], 1
    %31 = vsyncpa %s30, 0
    loop: start=0, step=1, limit=4
    $region2: #{tpu_custom_call.1} parent=1 // loop_pre_header
      _
    $region3: #{tpu_custom_call.1} parent=1 // loop_header
      %s33 = sphi 0, %s37
      %p34 = scmp.ge.s32.totalorder %s33, 4
      %s43 = sphi 0, %s45
      %s46 = sphi 0, %s43
      %s47 = sphi 0, %s46
      %s63 = sphi 0, %s47
      %s67 = sphi 0, %s67
      %s69 = sphi 0, %s67
      %s70 = sphi 0, %s69
      %s84 = sphi 0, %s70
      %s88 = sphi 0, %s88
      %s90 = sphi 0, %s88
      %s91 = sphi 0, %s90
      %s105 = sphi 0, %s91
      %s109 = sphi 0, %s109
      %s111 = sphi 0, %s109
      %s112 = sphi 0, %s111
      %s126 = sphi 0, %s112
      %s130 = sphi 0, %s130
      %s132 = sphi 0, %s130
      %s133 = sphi 0, %s132
      %s147 = sphi 0, %s133
      %s151 = sphi 0, %s151
      %s153 = sphi 0, %s151
      %s154 = sphi 0, %s153
      %s168 = sphi 0, %s154
      %s172 = sphi 0, %s172
      %s174 = sphi 0, %s172
      %s175 = sphi 0, %s174
      %s189 = sphi 0, %s175
      %s193 = sphi 0, %s193
      %s195 = sphi 0, %s193
      %s196 = sphi 0, %s195
      %s210 = sphi 0, %s196
      %s214 = sphi 0, %s214
      %s216 = sphi 0, %s214
      %s217 = sphi 0, %s216
      %s231 = sphi 0, %s217
      %s235 = sphi 0, %s235
      %s237 = sphi 0, %s235
      %s238 = sphi 0, %s237
      %s252 = sphi 0, %s238
      %s256 = sphi 0, %s256
      %s258 = sphi 0, %s256
      %s259 = sphi 0, %s258
      %s273 = sphi 0, %s259
      %s277 = sphi 0, %s277
      %s279 = sphi 0, %s277
      %s280 = sphi 0, %s279
      %s294 = sphi 0, %s280
      %s298 = sphi 0, %s298
      %s300 = sphi 0, %s298
      %s301 = sphi 0, %s300
      %s315 = sphi 0, %s301
      %s319 = sphi 0, %s319
      %s321 = sphi 0, %s319
      %s322 = sphi 0, %s321
      %s336 = sphi 0, %s322
      %s340 = sphi 0, %s340
      %s342 = sphi 0, %s340
      %s343 = sphi 0, %s342
      %s357 = sphi 0, %s343
      %s361 = sphi 0, %s361
      %s363 = sphi 0, %s361
      %s364 = sphi 0, %s363
      %s378 = sphi 0, %s364
      %s384 = sphi 0, %s386
      %s387 = sphi 0, %s384
      %s388 = sphi 0, %s387
      %s404 = sphi 0, %s388
    $region4: #{tpu_custom_call.1} parent=1 // loop_header_branch
      %36 = sbr.rel (%p34) target = $region8
    $region5: #{tpu_custom_call.1} parent=1 // loop_body
      %s38 = ssub.s32 %s33, 1
      %s39 = ssub.s32 %s33, 2
      %s40 = sadd.s32 %s33, 1
      %s41 = ssub.s32 %s33, %s40
      %p42 = scmp.eq.s32.totalorder %s41, 0
      %s44 = sadd.s32 %s43, 1
      %s45 = scalar_select %p42, %s43, %s44
      %p48 = pneg %p42
      %p49 = scmp.eq.s32.totalorder %s33, 1
      %p50 = por %p48, %p49
      %p51 = scmp.ne.s32.totalorder %s43, %s46
      %p52 = scmp.eq.s32.totalorder %s33, 0
      %p53 = por %p51, %p52
      %p54 = scmp.ne.s32.totalorder %s43, %s46
      %p55 = scmp.eq.s32.totalorder %s38, 1
      %p56 = por %p54, %p55
      %p57 = scmp.ne.s32.totalorder %s46, %s47
      %p58 = scmp.eq.s32.totalorder %s38, 0
      %p59 = por %p57, %p58
      %p60 = scmp.ne.s32.totalorder %s46, %s47
      %p61 = scmp.eq.s32.totalorder %s39, 1
      %p62 = por %p60, %p61
      %p64 = scmp.ne.s32.totalorder %s47, %s63
      %p65 = scmp.eq.s32.totalorder %s39, 0
      %p66 = por %p64, %p65
      %s68 = sadd.s32 %s67, 1
      %p71 = scmp.eq.s32.totalorder %s33, 1
      %p72 = scmp.ne.s32.totalorder %s67, %s69
      %p73 = scmp.eq.s32.totalorder %s33, 0
      %p74 = por %p72, %p73
      %p75 = scmp.ne.s32.totalorder %s67, %s69
      %p76 = scmp.eq.s32.totalorder %s38, 1
      %p77 = por %p75, %p76
      %p78 = scmp.ne.s32.totalorder %s69, %s70
      %p79 = scmp.eq.s32.totalorder %s38, 0
      %p80 = por %p78, %p79
      %p81 = scmp.ne.s32.totalorder %s69, %s70
      %p82 = scmp.eq.s32.totalorder %s39, 1
      %p83 = por %p81, %p82
      %p85 = scmp.ne.s32.totalorder %s70, %s84
      %p86 = scmp.eq.s32.totalorder %s39, 0
      %p87 = por %p85, %p86
      %s89 = sadd.s32 %s88, 1
      %p92 = scmp.eq.s32.totalorder %s33, 1
      %p93 = scmp.ne.s32.totalorder %s88, %s90
      %p94 = scmp.eq.s32.totalorder %s33, 0
      %p95 = por %p93, %p94
      %p96 = scmp.ne.s32.totalorder %s88, %s90
      %p97 = scmp.eq.s32.totalorder %s38, 1
      %p98 = por %p96, %p97
      %p99 = scmp.ne.s32.totalorder %s90, %s91
      %p100 = scmp.eq.s32.totalorder %s38, 0
      %p101 = por %p99, %p100
      %p102 = scmp.ne.s32.totalorder %s90, %s91
      %p103 = scmp.eq.s32.totalorder %s39, 1
      %p104 = por %p102, %p103
      %p106 = scmp.ne.s32.totalorder %s91, %s105
      %p107 = scmp.eq.s32.totalorder %s39, 0
      %p108 = por %p106, %p107
      %s110 = sadd.s32 %s109, 1
      %p113 = scmp.eq.s32.totalorder %s33, 1
      %p114 = scmp.ne.s32.totalorder %s109, %s111
      %p115 = scmp.eq.s32.totalorder %s33, 0
      %p116 = por %p114, %p115
      %p117 = scmp.ne.s32.totalorder %s109, %s111
      %p118 = scmp.eq.s32.totalorder %s38, 1
      %p119 = por %p117, %p118
      %p120 = scmp.ne.s32.totalorder %s111, %s112
      %p121 = scmp.eq.s32.totalorder %s38, 0
      %p122 = por %p120, %p121
      %p123 = scmp.ne.s32.totalorder %s111, %s112
      %p124 = scmp.eq.s32.totalorder %s39, 1
      %p125 = por %p123, %p124
      %p127 = scmp.ne.s32.totalorder %s112, %s126
      %p128 = scmp.eq.s32.totalorder %s39, 0
      %p129 = por %p127, %p128
      %s131 = sadd.s32 %s130, 1
      %p134 = scmp.eq.s32.totalorder %s33, 1
      %p135 = scmp.ne.s32.totalorder %s130, %s132
      %p136 = scmp.eq.s32.totalorder %s33, 0
      %p137 = por %p135, %p136
      %p138 = scmp.ne.s32.totalorder %s130, %s132
      %p139 = scmp.eq.s32.totalorder %s38, 1
      %p140 = por %p138, %p139
      %p141 = scmp.ne.s32.totalorder %s132, %s133
      %p142 = scmp.eq.s32.totalorder %s38, 0
      %p143 = por %p141, %p142
      %p144 = scmp.ne.s32.totalorder %s132, %s133
      %p145 = scmp.eq.s32.totalorder %s39, 1
      %p146 = por %p144, %p145
      %p148 = scmp.ne.s32.totalorder %s133, %s147
      %p149 = scmp.eq.s32.totalorder %s39, 0
      %p150 = por %p148, %p149
      %s152 = sadd.s32 %s151, 1
      %p155 = scmp.eq.s32.totalorder %s33, 1
      %p156 = scmp.ne.s32.totalorder %s151, %s153
      %p157 = scmp.eq.s32.totalorder %s33, 0
      %p158 = por %p156, %p157
      %p159 = scmp.ne.s32.totalorder %s151, %s153
      %p160 = scmp.eq.s32.totalorder %s38, 1
      %p161 = por %p159, %p160
      %p162 = scmp.ne.s32.totalorder %s153, %s154
      %p163 = scmp.eq.s32.totalorder %s38, 0
      %p164 = por %p162, %p163
      %p165 = scmp.ne.s32.totalorder %s153, %s154
      %p166 = scmp.eq.s32.totalorder %s39, 1
      %p167 = por %p165, %p166
      %p169 = scmp.ne.s32.totalorder %s154, %s168
      %p170 = scmp.eq.s32.totalorder %s39, 0
      %p171 = por %p169, %p170
      %s173 = sadd.s32 %s172, 1
      %p176 = scmp.eq.s32.totalorder %s33, 1
      %p177 = scmp.ne.s32.totalorder %s172, %s174
      %p178 = scmp.eq.s32.totalorder %s33, 0
      %p179 = por %p177, %p178
      %p180 = scmp.ne.s32.totalorder %s172, %s174
      %p181 = scmp.eq.s32.totalorder %s38, 1
      %p182 = por %p180, %p181
      %p183 = scmp.ne.s32.totalorder %s174, %s175
      %p184 = scmp.eq.s32.totalorder %s38, 0
      %p185 = por %p183, %p184
      %p186 = scmp.ne.s32.totalorder %s174, %s175
      %p187 = scmp.eq.s32.totalorder %s39, 1
      %p188 = por %p186, %p187
      %p190 = scmp.ne.s32.totalorder %s175, %s189
      %p191 = scmp.eq.s32.totalorder %s39, 0
      %p192 = por %p190, %p191
      %s194 = sadd.s32 %s193, 1
      %p197 = scmp.eq.s32.totalorder %s33, 1
      %p198 = scmp.ne.s32.totalorder %s193, %s195
      %p199 = scmp.eq.s32.totalorder %s33, 0
      %p200 = por %p198, %p199
      %p201 = scmp.ne.s32.totalorder %s193, %s195
      %p202 = scmp.eq.s32.totalorder %s38, 1
      %p203 = por %p201, %p202
      %p204 = scmp.ne.s32.totalorder %s195, %s196
      %p205 = scmp.eq.s32.totalorder %s38, 0
      %p206 = por %p204, %p205
      %p207 = scmp.ne.s32.totalorder %s195, %s196
      %p208 = scmp.eq.s32.totalorder %s39, 1
      %p209 = por %p207, %p208
      %p211 = scmp.ne.s32.totalorder %s196, %s210
      %p212 = scmp.eq.s32.totalorder %s39, 0
      %p213 = por %p211, %p212
      %s215 = sadd.s32 %s214, 1
      %p218 = scmp.eq.s32.totalorder %s33, 1
      %p219 = scmp.ne.s32.totalorder %s214, %s216
      %p220 = scmp.eq.s32.totalorder %s33, 0
      %p221 = por %p219, %p220
      %p222 = scmp.ne.s32.totalorder %s214, %s216
      %p223 = scmp.eq.s32.totalorder %s38, 1
      %p224 = por %p222, %p223
      %p225 = scmp.ne.s32.totalorder %s216, %s217
      %p226 = scmp.eq.s32.totalorder %s38, 0
      %p227 = por %p225, %p226
      %p228 = scmp.ne.s32.totalorder %s216, %s217
      %p229 = scmp.eq.s32.totalorder %s39, 1
      %p230 = por %p228, %p229
      %p232 = scmp.ne.s32.totalorder %s217, %s231
      %p233 = scmp.eq.s32.totalorder %s39, 0
      %p234 = por %p232, %p233
      %s236 = sadd.s32 %s235, 1
      %p239 = scmp.eq.s32.totalorder %s33, 1
      %p240 = scmp.ne.s32.totalorder %s235, %s237
      %p241 = scmp.eq.s32.totalorder %s33, 0
      %p242 = por %p240, %p241
      %p243 = scmp.ne.s32.totalorder %s235, %s237
      %p244 = scmp.eq.s32.totalorder %s38, 1
      %p245 = por %p243, %p244
      %p246 = scmp.ne.s32.totalorder %s237, %s238
      %p247 = scmp.eq.s32.totalorder %s38, 0
      %p248 = por %p246, %p247
      %p249 = scmp.ne.s32.totalorder %s237, %s238
      %p250 = scmp.eq.s32.totalorder %s39, 1
      %p251 = por %p249, %p250
      %p253 = scmp.ne.s32.totalorder %s238, %s252
      %p254 = scmp.eq.s32.totalorder %s39, 0
      %p255 = por %p253, %p254
      %s257 = sadd.s32 %s256, 1
      %p260 = scmp.eq.s32.totalorder %s33, 1
      %p261 = scmp.ne.s32.totalorder %s256, %s258
      %p262 = scmp.eq.s32.totalorder %s33, 0
      %p263 = por %p261, %p262
      %p264 = scmp.ne.s32.totalorder %s256, %s258
      %p265 = scmp.eq.s32.totalorder %s38, 1
      %p266 = por %p264, %p265
      %p267 = scmp.ne.s32.totalorder %s258, %s259
      %p268 = scmp.eq.s32.totalorder %s38, 0
      %p269 = por %p267, %p268
      %p270 = scmp.ne.s32.totalorder %s258, %s259
      %p271 = scmp.eq.s32.totalorder %s39, 1
      %p272 = por %p270, %p271
      %p274 = scmp.ne.s32.totalorder %s259, %s273
      %p275 = scmp.eq.s32.totalorder %s39, 0
      %p276 = por %p274, %p275
      %s278 = sadd.s32 %s277, 1
      %p281 = scmp.eq.s32.totalorder %s33, 1
      %p282 = scmp.ne.s32.totalorder %s277, %s279
      %p283 = scmp.eq.s32.totalorder %s33, 0
      %p284 = por %p282, %p283
      %p285 = scmp.ne.s32.totalorder %s277, %s279
      %p286 = scmp.eq.s32.totalorder %s38, 1
      %p287 = por %p285, %p286
      %p288 = scmp.ne.s32.totalorder %s279, %s280
      %p289 = scmp.eq.s32.totalorder %s38, 0
      %p290 = por %p288, %p289
      %p291 = scmp.ne.s32.totalorder %s279, %s280
      %p292 = scmp.eq.s32.totalorder %s39, 1
      %p293 = por %p291, %p292
      %p295 = scmp.ne.s32.totalorder %s280, %s294
      %p296 = scmp.eq.s32.totalorder %s39, 0
      %p297 = por %p295, %p296
      %s299 = sadd.s32 %s298, 1
      %p302 = scmp.eq.s32.totalorder %s33, 1
      %p303 = scmp.ne.s32.totalorder %s298, %s300
      %p304 = scmp.eq.s32.totalorder %s33, 0
      %p305 = por %p303, %p304
      %p306 = scmp.ne.s32.totalorder %s298, %s300
      %p307 = scmp.eq.s32.totalorder %s38, 1
      %p308 = por %p306, %p307
      %p309 = scmp.ne.s32.totalorder %s300, %s301
      %p310 = scmp.eq.s32.totalorder %s38, 0
      %p311 = por %p309, %p310
      %p312 = scmp.ne.s32.totalorder %s300, %s301
      %p313 = scmp.eq.s32.totalorder %s39, 1
      %p314 = por %p312, %p313
      %p316 = scmp.ne.s32.totalorder %s301, %s315
      %p317 = scmp.eq.s32.totalorder %s39, 0
      %p318 = por %p316, %p317
      %s320 = sadd.s32 %s319, 1
      %p323 = scmp.eq.s32.totalorder %s33, 1
      %p324 = scmp.ne.s32.totalorder %s319, %s321
      %p325 = scmp.eq.s32.totalorder %s33, 0
      %p326 = por %p324, %p325
      %p327 = scmp.ne.s32.totalorder %s319, %s321
      %p328 = scmp.eq.s32.totalorder %s38, 1
      %p329 = por %p327, %p328
      %p330 = scmp.ne.s32.totalorder %s321, %s322
      %p331 = scmp.eq.s32.totalorder %s38, 0
      %p332 = por %p330, %p331
      %p333 = scmp.ne.s32.totalorder %s321, %s322
      %p334 = scmp.eq.s32.totalorder %s39, 1
      %p335 = por %p333, %p334
      %p337 = scmp.ne.s32.totalorder %s322, %s336
      %p338 = scmp.eq.s32.totalorder %s39, 0
      %p339 = por %p337, %p338
      %s341 = sadd.s32 %s340, 1
      %p344 = scmp.eq.s32.totalorder %s33, 1
      %p345 = scmp.ne.s32.totalorder %s340, %s342
      %p346 = scmp.eq.s32.totalorder %s33, 0
      %p347 = por %p345, %p346
      %p348 = scmp.ne.s32.totalorder %s340, %s342
      %p349 = scmp.eq.s32.totalorder %s38, 1
      %p350 = por %p348, %p349
      %p351 = scmp.ne.s32.totalorder %s342, %s343
      %p352 = scmp.eq.s32.totalorder %s38, 0
      %p353 = por %p351, %p352
      %p354 = scmp.ne.s32.totalorder %s342, %s343
      %p355 = scmp.eq.s32.totalorder %s39, 1
      %p356 = por %p354, %p355
      %p358 = scmp.ne.s32.totalorder %s343, %s357
      %p359 = scmp.eq.s32.totalorder %s39, 0
      %p360 = por %p358, %p359
      %s362 = sadd.s32 %s361, 1
      %p365 = scmp.eq.s32.totalorder %s33, 1
      %p366 = scmp.ne.s32.totalorder %s361, %s363
      %p367 = scmp.eq.s32.totalorder %s33, 0
      %p368 = por %p366, %p367
      %p369 = scmp.ne.s32.totalorder %s361, %s363
      %p370 = scmp.eq.s32.totalorder %s38, 1
      %p371 = por %p369, %p370
      %p372 = scmp.ne.s32.totalorder %s363, %s364
      %p373 = scmp.eq.s32.totalorder %s38, 0
      %p374 = por %p372, %p373
      %p375 = scmp.ne.s32.totalorder %s363, %s364
      %p376 = scmp.eq.s32.totalorder %s39, 1
      %p377 = por %p375, %p376
      %p379 = scmp.ne.s32.totalorder %s364, %s378
      %p380 = scmp.eq.s32.totalorder %s39, 0
      %p381 = por %p379, %p380
      %s382 = ssub.s32 %s33, %s40
      %p383 = scmp.eq.s32.totalorder %s382, 0
      %s385 = sadd.s32 %s384, 1
      %s386 = scalar_select %p383, %s384, %s385
      %p389 = pneg %p383
      %p390 = scmp.eq.s32.totalorder %s33, 1
      %p391 = por %p389, %p390
      %p392 = scmp.ne.s32.totalorder %s384, %s387
      %p393 = scmp.eq.s32.totalorder %s33, 0
      %p394 = por %p392, %p393
      %p395 = scmp.ne.s32.totalorder %s384, %s387
      %p396 = scmp.eq.s32.totalorder %s38, 1
      %p397 = por %p395, %p396
      %p398 = scmp.ne.s32.totalorder %s387, %s388
      %p399 = scmp.eq.s32.totalorder %s38, 0
      %p400 = por %p398, %p399
      %p401 = scmp.ne.s32.totalorder %s387, %s388
      %p402 = scmp.eq.s32.totalorder %s39, 1
      %p403 = por %p401, %p402
      %p405 = scmp.ne.s32.totalorder %s388, %s404
      %p406 = scmp.eq.s32.totalorder %s39, 0
      %p407 = por %p405, %p406
      %p408 = scmp.le.s32.totalorder 1, %s33
      %p409 = scmp.lt.s32.totalorder %s33, 3
      %p410 = pnand %p408, %p409
      %p411 = pneg %p410
      // Predicated region
      $region9: #{tpu_custom_call.1} parent=5 // pred_check
        _
      $region10: #{tpu_custom_call.1} parent=5 // pred_check_branch
        %413 = sbr.rel (%p410) target = $region12
      $region11: #{tpu_custom_call.1} parent=5 // pred_region
        %s414 = ssub.s32 %s33, 1
        // Predicated region
        $region13: #{tpu_custom_call.1} parent=11 // pred_check
          %p415 = pneg %p80
        $region14: #{tpu_custom_call.1} parent=11 // pred_check_branch
          %417 = sbr.rel (%p415) target = $region16
        $region15: #{tpu_custom_call.1} parent=11 // pred_region
          %s419 = ssub.s32 128, 128
          %420 = vsyncadd [#allocation6], %s419
          %s422 = sshll.u32 [#allocation5], 4
          %s423 = int_to_ptr.vmem [resolvable:$true] %s422
          %425 = dma.hbm_to_vmem [thread:$0]  %s1, 128, %s423, [#allocation6]
        $region16: #{tpu_custom_call.1} parent=11 // pred_fallthru
          _
        // Predicated region
        $region17: #{tpu_custom_call.1} parent=11 // pred_check
          %p426 = pneg %p101
        $region18: #{tpu_custom_call.1} parent=11 // pred_check_branch
          %428 = sbr.rel (%p426) target = $region20
        $region19: #{tpu_custom_call.1} parent=11 // pred_region
          %s430 = ssub.s32 256, 256
          %431 = vsyncadd [#allocation6], %s430
          %s432 = sshll.u32 [#allocation7], 4
          %s433 = int_to_ptr.vmem [resolvable:$true] %s432
          %438 = dma.hbm_to_vmem [thread:$0]  %s2, 256, %s433, [#allocation6], 128, 128, 8
        $region20: #{tpu_custom_call.1} parent=11 // pred_fallthru
          _
        // Predicated region
        $region21: #{tpu_custom_call.1} parent=11 // pred_check
          %p439 = pneg %p122
        $region22: #{tpu_custom_call.1} parent=11 // pred_check_branch
          %441 = sbr.rel (%p439) target = $region24
        $region23: #{tpu_custom_call.1} parent=11 // pred_region
          %s443 = ssub.s32 256, 256
          %444 = vsyncadd [#allocation9], %s443
          %s445 = sshll.u32 [#allocation8], 4
          %s446 = int_to_ptr.vmem [resolvable:$true] %s445
          %451 = dma.hbm_to_vmem [thread:$0]  %s3, 256, %s446, [#allocation9], 128, 128, 8
        $region24: #{tpu_custom_call.1} parent=11 // pred_fallthru
          _
        // Predicated region
        $region25: #{tpu_custom_call.1} parent=11 // pred_check
          %p452 = pneg %p143
        $region26: #{tpu_custom_call.1} parent=11 // pred_check_branch
          %454 = sbr.rel (%p452) target = $region28
        $region27: #{tpu_custom_call.1} parent=11 // pred_region
          %s456 = ssub.s32 256, 256
          %457 = vsyncadd [#allocation9], %s456
          %s458 = sshll.u32 [#allocation10], 4
          %s459 = int_to_ptr.vmem [resolvable:$true] %s458
          %464 = dma.hbm_to_vmem [thread:$0]  %s4, 256, %s459, [#allocation9], 128, 128, 8
        $region28: #{tpu_custom_call.1} parent=11 // pred_fallthru
          _
        // Predicated region
        $region29: #{tpu_custom_call.1} parent=11 // pred_check
          %p465 = pneg %p164
        $region30: #{tpu_custom_call.1} parent=11 // pred_check_branch
          %467 = sbr.rel (%p465) target = $region32
        $region31: #{tpu_custom_call.1} parent=11 // pred_region
          _
        $region32: #{tpu_custom_call.1} parent=11 // pred_fallthru
          _
        // Predicated region
        $region33: #{tpu_custom_call.1} parent=11 // pred_check
          %p468 = pneg %p185
        $region34: #{tpu_custom_call.1} parent=11 // pred_check_branch
          %470 = sbr.rel (%p468) target = $region36
        $region35: #{tpu_custom_call.1} parent=11 // pred_region
          %s472 = ssub.s32 16, 16
          %473 = vsyncadd [#allocation12], %s472
          %s475 = sshll.u32 [#allocation11], 4
          %s476 = int_to_ptr.vmem [resolvable:$true] %s475
          %478 = dma.hbm_to_vmem [thread:$0]  %s6, 16, %s476, [#allocation12]
        $region36: #{tpu_custom_call.1} parent=11 // pred_fallthru
          _
        // Predicated region
        $region37: #{tpu_custom_call.1} parent=11 // pred_check
          %p479 = pneg %p206
        $region38: #{tpu_custom_call.1} parent=11 // pred_check_branch
          %481 = sbr.rel (%p479) target = $region40
        $region39: #{tpu_custom_call.1} parent=11 // pred_region
          %s483 = ssub.s32 16, 16
          %484 = vsyncadd [#allocation12], %s483
          %s486 = sshll.u32 [#allocation13], 4
          %s487 = int_to_ptr.vmem [resolvable:$true] %s486
          %489 = dma.hbm_to_vmem [thread:$0]  %s7, 16, %s487, [#allocation12]
        $region40: #{tpu_custom_call.1} parent=11 // pred_fallthru
          _
        // Predicated region
        $region41: #{tpu_custom_call.1} parent=11 // pred_check
          %p490 = pneg %p227
        $region42: #{tpu_custom_call.1} parent=11 // pred_check_branch
          %492 = sbr.rel (%p490) target = $region44
        $region43: #{tpu_custom_call.1} parent=11 // pred_region
          _
        $region44: #{tpu_custom_call.1} parent=11 // pred_fallthru
          _
        // Predicated region
        $region45: #{tpu_custom_call.1} parent=11 // pred_check
          %p493 = pneg %p248
        $region46: #{tpu_custom_call.1} parent=11 // pred_check_branch
          %495 = sbr.rel (%p493) target = $region48
        $region47: #{tpu_custom_call.1} parent=11 // pred_region
          %s497 = ssub.s32 16, 16
          %498 = vsyncadd [#allocation15], %s497
          %s500 = sshll.u32 [#allocation14], 4
          %s501 = int_to_ptr.vmem [resolvable:$true] %s500
          %503 = dma.hbm_to_vmem [thread:$0]  %s9, 16, %s501, [#allocation15]
        $region48: #{tpu_custom_call.1} parent=11 // pred_fallthru
          _
        // Predicated region
        $region49: #{tpu_custom_call.1} parent=11 // pred_check
          %p504 = pneg %p269
        $region50: #{tpu_custom_call.1} parent=11 // pred_check_branch
          %506 = sbr.rel (%p504) target = $region52
        $region51: #{tpu_custom_call.1} parent=11 // pred_region
          %s508 = ssub.s32 16, 16
          %509 = vsyncadd [#allocation15], %s508
          %s511 = sshll.u32 [#allocation16], 4
          %s512 = int_to_ptr.vmem [resolvable:$true] %s511
          %514 = dma.hbm_to_vmem [thread:$0]  %s10, 16, %s512, [#allocation15]
        $region52: #{tpu_custom_call.1} parent=11 // pred_fallthru
          _
        // Predicated region
        $region53: #{tpu_custom_call.1} parent=11 // pred_check
          %p515 = pneg %p290
        $region54: #{tpu_custom_call.1} parent=11 // pred_check_branch
          %517 = sbr.rel (%p515) target = $region56
        $region55: #{tpu_custom_call.1} parent=11 // pred_region
          %s519 = ssub.s32 16, 16
          %520 = vsyncadd [#allocation18], %s519
          %s522 = sshll.u32 [#allocation17], 4
          %s523 = int_to_ptr.vmem [resolvable:$true] %s522
          %525 = dma.hbm_to_vmem [thread:$0]  %s11, 16, %s523, [#allocation18]
        $region56: #{tpu_custom_call.1} parent=11 // pred_fallthru
          _
        // Predicated region
        $region57: #{tpu_custom_call.1} parent=11 // pred_check
          %p526 = pneg %p311
        $region58: #{tpu_custom_call.1} parent=11 // pred_check_branch
          %528 = sbr.rel (%p526) target = $region60
        $region59: #{tpu_custom_call.1} parent=11 // pred_region
          _
        $region60: #{tpu_custom_call.1} parent=11 // pred_fallthru
          _
        // Predicated region
        $region61: #{tpu_custom_call.1} parent=11 // pred_check
          %p529 = pneg %p332
        $region62: #{tpu_custom_call.1} parent=11 // pred_check_branch
          %531 = sbr.rel (%p529) target = $region64
        $region63: #{tpu_custom_call.1} parent=11 // pred_region
          %s533 = ssub.s32 16, 16
          %534 = vsyncadd [#allocation18], %s533
          %s536 = sshll.u32 [#allocation19], 4
          %s537 = int_to_ptr.vmem [resolvable:$true] %s536
          %539 = dma.hbm_to_vmem [thread:$0]  %s13, 16, %s537, [#allocation18]
        $region64: #{tpu_custom_call.1} parent=11 // pred_fallthru
          _
        // Predicated region
        $region65: #{tpu_custom_call.1} parent=11 // pred_check
          %p540 = pneg %p353
        $region66: #{tpu_custom_call.1} parent=11 // pred_check_branch
          %542 = sbr.rel (%p540) target = $region68
        $region67: #{tpu_custom_call.1} parent=11 // pred_region
          _
        $region68: #{tpu_custom_call.1} parent=11 // pred_fallthru
          _
        // Predicated region
        $region69: #{tpu_custom_call.1} parent=11 // pred_check
          %p543 = pneg %p374
        $region70: #{tpu_custom_call.1} parent=11 // pred_check_branch
          %545 = sbr.rel (%p543) target = $region72
        $region71: #{tpu_custom_call.1} parent=11 // pred_region
          _
        $region72: #{tpu_custom_call.1} parent=11 // pred_fallthru
          _
      $region12: #{tpu_custom_call.1} parent=5 // pred_fallthru
        _
      %p546 = scmp.lt.s32.totalorder %s33, 2
      // Predicated region
      $region73: #{tpu_custom_call.1} parent=5 // pred_check
        %p547 = pneg %p546
      $region74: #{tpu_custom_call.1} parent=5 // pred_check_branch
        %549 = sbr.rel (%p547) target = $region76
      $region75: #{tpu_custom_call.1} parent=5 // pred_region
        // Predicated region
        $region77: #{tpu_custom_call.1} parent=75 // pred_check
          %p550 = pneg %p53
        $region78: #{tpu_custom_call.1} parent=75 // pred_check_branch
          %552 = sbr.rel (%p550) target = $region80
        $region79: #{tpu_custom_call.1} parent=75 // pred_region
          %s553 = sand.u32 %s43, 1
          %s554 = scalar_lea.sflag [#allocation3], %s553
          %s555 = sand.u32 %s43, 1
          %s556 = smul.addr %s555, 8
          %s557 = scalar_lea.vmem [#allocation2], %s556
          %s559 = ssub.s32 128, 128
          %560 = vsyncadd %s554, %s559
          %s561 = smul.addr %s33, 128
          %s562 = scalar_lea.hbm %s0, %s561
          %s564 = sshll.u32 %s557, 4
          %s565 = int_to_ptr.vmem [resolvable:$true] %s564
          %567 = dma.hbm_to_vmem [thread:$0]  %s562, 128, %s565, %s554
        $region80: #{tpu_custom_call.1} parent=75 // pred_fallthru
          _
      $region76: #{tpu_custom_call.1} parent=5 // pred_fallthru
        _
      %p568 = scmp.le.s32.totalorder 1, %s33
      %p569 = scmp.lt.s32.totalorder %s33, 3
      %p570 = pnand %p568, %p569
      %p571 = pneg %p570
      // Predicated region
      $region81: #{tpu_custom_call.1} parent=5 // pred_check
        _
      $region82: #{tpu_custom_call.1} parent=5 // pred_check_branch
        %573 = sbr.rel (%p570) target = $region84
      $region83: #{tpu_custom_call.1} parent=5 // pred_region
        %s574 = ssub.s32 %s33, 1
        %s575 = sand.u32 %s46, 1
        %s576 = scalar_lea.sflag [#allocation3], %s575
        %s577 = sand.u32 %s46, 1
        %s578 = smul.addr %s577, 8
        %s579 = scalar_lea.vmem [#allocation2], %s578
        // Predicated region
        $region85: #{tpu_custom_call.1} parent=83 // pred_check
          %p580 = pneg %p59
        $region86: #{tpu_custom_call.1} parent=83 // pred_check_branch
          %582 = sbr.rel (%p580) target = $region88
        $region87: #{tpu_custom_call.1} parent=83 // pred_region
          %583 = dma.done %s576, 128
        $region88: #{tpu_custom_call.1} parent=83 // pred_fallthru
          _
        // Predicated region
        $region89: #{tpu_custom_call.1} parent=83 // pred_check
          %p584 = pneg %p80
        $region90: #{tpu_custom_call.1} parent=83 // pred_check_branch
          %586 = sbr.rel (%p584) target = $region92
        $region91: #{tpu_custom_call.1} parent=83 // pred_region
          %587 = dma.done [#allocation6], 128
        $region92: #{tpu_custom_call.1} parent=83 // pred_fallthru
          _
        // Predicated region
        $region93: #{tpu_custom_call.1} parent=83 // pred_check
          %p588 = pneg %p101
        $region94: #{tpu_custom_call.1} parent=83 // pred_check_branch
          %590 = sbr.rel (%p588) target = $region96
        $region95: #{tpu_custom_call.1} parent=83 // pred_region
          %591 = dma.done [#allocation6], 256
        $region96: #{tpu_custom_call.1} parent=83 // pred_fallthru
          _
        // Predicated region
        $region97: #{tpu_custom_call.1} parent=83 // pred_check
          %p592 = pneg %p122
        $region98: #{tpu_custom_call.1} parent=83 // pred_check_branch
          %594 = sbr.rel (%p592) target = $region100
        $region99: #{tpu_custom_call.1} parent=83 // pred_region
          %595 = dma.done [#allocation9], 256
        $region100: #{tpu_custom_call.1} parent=83 // pred_fallthru
          _
        // Predicated region
        $region101: #{tpu_custom_call.1} parent=83 // pred_check
          %p596 = pneg %p143
        $region102: #{tpu_custom_call.1} parent=83 // pred_check_branch
          %598 = sbr.rel (%p596) target = $region104
        $region103: #{tpu_custom_call.1} parent=83 // pred_region
          %599 = dma.done [#allocation9], 256
        $region104: #{tpu_custom_call.1} parent=83 // pred_fallthru
          _
        // Predicated region
        $region105: #{tpu_custom_call.1} parent=83 // pred_check
          %p600 = pneg %p185
        $region106: #{tpu_custom_call.1} parent=83 // pred_check_branch
          %602 = sbr.rel (%p600) target = $region108
        $region107: #{tpu_custom_call.1} parent=83 // pred_region
          %603 = dma.done [#allocation12], 16
        $region108: #{tpu_custom_call.1} parent=83 // pred_fallthru
          _
        // Predicated region
        $region109: #{tpu_custom_call.1} parent=83 // pred_check
          %p604 = pneg %p206
        $region110: #{tpu_custom_call.1} parent=83 // pred_check_branch
          %606 = sbr.rel (%p604) target = $region112
        $region111: #{tpu_custom_call.1} parent=83 // pred_region
          %607 = dma.done [#allocation12], 16
        $region112: #{tpu_custom_call.1} parent=83 // pred_fallthru
          _
        // Predicated region
        $region113: #{tpu_custom_call.1} parent=83 // pred_check
          %p608 = pneg %p248
        $region114: #{tpu_custom_call.1} parent=83 // pred_check_branch
          %610 = sbr.rel (%p608) target = $region116
        $region115: #{tpu_custom_call.1} parent=83 // pred_region
          %611 = dma.done [#allocation15], 16
        $region116: #{tpu_custom_call.1} parent=83 // pred_fallthru
          _
        // Predicated region
        $region117: #{tpu_custom_call.1} parent=83 // pred_check
          %p612 = pneg %p269
        $region118: #{tpu_custom_call.1} parent=83 // pred_check_branch
          %614 = sbr.rel (%p612) target = $region120
        $region119: #{tpu_custom_call.1} parent=83 // pred_region
          %615 = dma.done [#allocation15], 16
        $region120: #{tpu_custom_call.1} parent=83 // pred_fallthru
          _
        // Predicated region
        $region121: #{tpu_custom_call.1} parent=83 // pred_check
          %p616 = pneg %p290
        $region122: #{tpu_custom_call.1} parent=83 // pred_check_branch
          %618 = sbr.rel (%p616) target = $region124
        $region123: #{tpu_custom_call.1} parent=83 // pred_region
          %619 = dma.done [#allocation18], 16
        $region124: #{tpu_custom_call.1} parent=83 // pred_fallthru
          _
        // Predicated region
        $region125: #{tpu_custom_call.1} parent=83 // pred_check
          %p620 = pneg %p332
        $region126: #{tpu_custom_call.1} parent=83 // pred_check_branch
          %622 = sbr.rel (%p620) target = $region128
        $region127: #{tpu_custom_call.1} parent=83 // pred_region
          %623 = dma.done [#allocation18], 16
        $region128: #{tpu_custom_call.1} parent=83 // pred_fallthru
          _
        %s624 = sand.u32 %s46, 1
        %s625 = scalar_lea.sflag [#allocation3], %s624
        %s626 = sand.u32 %s46, 1
        %s627 = smul.addr %s626, 8
        %s628 = scalar_lea.vmem [#allocation2], %s627
        %p629 = pneg %p59
        %p630 = pneg %p56
        %p631 = pneg %p80
        %p632 = pneg %p77
        %p633 = pneg %p101
        %p634 = pneg %p98
        %p635 = pneg %p122
        %p636 = pneg %p119
        %p637 = pneg %p143
        %p638 = pneg %p140
        %p639 = pneg %p164
        %p640 = pneg %p161
        %p641 = pneg %p185
        %p642 = pneg %p182
        %p643 = pneg %p206
        %p644 = pneg %p203
        %p645 = pneg %p227
        %p646 = pneg %p224
        %p647 = pneg %p248
        %p648 = pneg %p245
        %p649 = pneg %p269
        %p650 = pneg %p266
        %p651 = pneg %p290
        %p652 = pneg %p287
        %p653 = pneg %p311
        %p654 = pneg %p308
        %p655 = pneg %p332
        %p656 = pneg %p329
        %p657 = pneg %p353
        %p658 = pneg %p350
        %p659 = pneg %p374
        %p660 = pneg %p371
        %p661 = pneg %p400
        %p662 = pneg %p397
        %s663 = sand.u32 %s387, 1
        %s664 = scalar_lea.sflag [#allocation4], %s663
        %s665 = sand.u32 %s387, 1
        %s666 = smul.addr %s665, 8
        %s667 = scalar_lea.vmem [#allocation20], %s666
        %v668 = vld [vmem:[%s579] sm:$0xff]
        %v669 = vmul.f32 %v668, 4.0
        %v670 = vld [vmem:[#allocation5] sm:$0xff]
        %v671 = vadd.f32 %v669, %v670
        %v672 = vld [vmem:[#allocation7] sm:$0xff]
        %v673 = vld [vmem:[#allocation7 + $0x8] sm:$0xff]
        %v674 = vld [vmem:[%s5] sm:$0x1]
        %v676 = vlaneseq
        %v677 = vshrl.u32 %v676, 7
        %v678 = vsub.s32 0, %v677
        %v679 = vrot.slane %v674, %v678
        %vm681 = vcmask 130048
        %v683 = vsel %vm681, %v671, 0
        %685 = vmatprep.subr.mxu0 0.0
        %686 = vmatpush1.msra.mxu0 %v672
        %687 = vmatprep.subr.mxu0 0.0
        %688 = vmatpush1.msra.mxu0 %v673
        %689 = vmatprep.subr.mxu0 0.0
        %690 = vmatpush1.msra.mxu0 0.0
        %691 = vmatprep.subr.mxu0 0.0
        %692 = vmatpush1.msra.mxu0 0.0
        %693 = vmatprep.subr.mxu0 0.0
        %694 = vmatpush1.msra.mxu0 0.0
        %695 = vmatprep.subr.mxu0 0.0
        %696 = vmatpush1.msra.mxu0 0.0
        %697 = vmatprep.subr.mxu0 0.0
        %698 = vmatpush1.msra.mxu0 0.0
        %699 = vmatprep.subr.mxu0 0.0
        %700 = vmatpush1.msra.mxu0 0.0
        %701 = vmatprep.subr.mxu0 0.0
        %702 = vmatpush1.msra.mxu0 0.0
        %703 = vmatprep.subr.mxu0 0.0
        %704 = vmatpush1.msra.mxu0 0.0
        %705 = vmatprep.subr.mxu0 0.0
        %706 = vmatpush1.msra.mxu0 0.0
        %707 = vmatprep.subr.mxu0 0.0
        %708 = vmatpush1.msra.mxu0 0.0
        %709 = vmatprep.subr.mxu0 0.0
        %710 = vmatpush1.msra.mxu0 0.0
        %711 = vmatprep.subr.mxu0 0.0
        %712 = vmatpush1.msra.mxu0 0.0
        %713 = vmatprep.subr.mxu0 0.0
        %714 = vmatpush1.msra.mxu0 0.0
        %715 = vmatprep.subr.mxu0 0.0
        %716 = vmatpush1.msra.mxu0 0.0
        %717 = vmatprep.subr.mxu0 0.0
        %718 = vmatpush1.msra.mxu0 0.0
        %719 = vmatprep.subr.mxu0 0.0
        %720 = vmatpush1.msra.mxu0 0.0
        %721 = vmatprep.subr.mxu0 0.0
        %722 = vmatpush1.msra.mxu0 0.0
        %723 = vmatprep.subr.mxu0 0.0
        %724 = vmatpush1.msra.mxu0 0.0
        %725 = vmatprep.subr.mxu0 0.0
        %726 = vmatpush1.msra.mxu0 0.0
        %727 = vmatprep.subr.mxu0 0.0
        %728 = vmatpush1.msra.mxu0 0.0
        %729 = vmatprep.subr.mxu0 0.0
        %730 = vmatpush1.msra.mxu0 0.0
        %731 = vmatprep.subr.mxu0 0.0
        %732 = vmatpush1.msra.mxu0 0.0
        %733 = vmatprep.subr.mxu0 0.0
        %734 = vmatpush1.msra.mxu0 0.0
        %735 = vmatprep.subr.mxu0 0.0
        %736 = vmatpush1.msra.mxu0 0.0
        %737 = vmatprep.subr.mxu0 0.0
        %738 = vmatpush1.msra.mxu0 0.0
        %739 = vmatprep.subr.mxu0 0.0
        %740 = vmatpush1.msra.mxu0 0.0
        %741 = vmatprep.subr.mxu0 0.0
        %742 = vmatpush1.msra.mxu0 0.0
        %743 = vmatprep.subr.mxu0 0.0
        %744 = vmatpush1.msra.mxu0 0.0
        %745 = vmatprep.subr.mxu0 0.0
        %746 = vmatpush1.msra.mxu0 0.0
        %747 = vmatprep.subr.mxu0 0.0
        %748 = vmatpush1.msra.mxu0 0.0
        %749 = vmatprep.mubr.f32.mxu0 0.0
        %750 = vmatmul.mubr.f32.gmra.mrb[0].mxu0 %v683
        %v751 = vpop.f32.mrb[0].mxu0
        %v752 = vadd.f32 %v679, %v751
        %v753 = vpop.f32.mrb[0].mxu0
        %754 = vdwg.mxu0
        %v755 = vld [vmem:[#allocation8] sm:$0xff]
        %v756 = vld [vmem:[#allocation8 + $0x8] sm:$0xff]
        %v757 = vld [vmem:[#allocation11] sm:$0x1]
        %v759 = vlaneseq
        %v760 = vshrl.u32 %v759, 7
        %v761 = vsub.s32 0, %v760
        %v762 = vrot.slane %v757, %v761
        %764 = vmatprep.subr.mxu0 0.0
        %765 = vmatpush1.msra.mxu0 %v755
        %766 = vmatprep.subr.mxu0 0.0
        %767 = vmatpush1.msra.mxu0 %v756
        %768 = vmatprep.subr.mxu0 0.0
        %769 = vmatpush1.msra.mxu0 0.0
        %770 = vmatprep.subr.mxu0 0.0
        %771 = vmatpush1.msra.mxu0 0.0
        %772 = vmatprep.subr.mxu0 0.0
        %773 = vmatpush1.msra.mxu0 0.0
        %774 = vmatprep.subr.mxu0 0.0
        %775 = vmatpush1.msra.mxu0 0.0
        %776 = vmatprep.subr.mxu0 0.0
        %777 = vmatpush1.msra.mxu0 0.0
        %778 = vmatprep.subr.mxu0 0.0
        %779 = vmatpush1.msra.mxu0 0.0
        %780 = vmatprep.subr.mxu0 0.0
        %781 = vmatpush1.msra.mxu0 0.0
        %782 = vmatprep.subr.mxu0 0.0
        %783 = vmatpush1.msra.mxu0 0.0
        %784 = vmatprep.subr.mxu0 0.0
        %785 = vmatpush1.msra.mxu0 0.0
        %786 = vmatprep.subr.mxu0 0.0
        %787 = vmatpush1.msra.mxu0 0.0
        %788 = vmatprep.subr.mxu0 0.0
        %789 = vmatpush1.msra.mxu0 0.0
        %790 = vmatprep.subr.mxu0 0.0
        %791 = vmatpush1.msra.mxu0 0.0
        %792 = vmatprep.subr.mxu0 0.0
        %793 = vmatpush1.msra.mxu0 0.0
        %794 = vmatprep.subr.mxu0 0.0
        %795 = vmatpush1.msra.mxu0 0.0
        %796 = vmatprep.subr.mxu0 0.0
        %797 = vmatpush1.msra.mxu0 0.0
        %798 = vmatprep.subr.mxu0 0.0
        %799 = vmatpush1.msra.mxu0 0.0
        %800 = vmatprep.subr.mxu0 0.0
        %801 = vmatpush1.msra.mxu0 0.0
        %802 = vmatprep.subr.mxu0 0.0
        %803 = vmatpush1.msra.mxu0 0.0
        %804 = vmatprep.subr.mxu0 0.0
        %805 = vmatpush1.msra.mxu0 0.0
        %806 = vmatprep.subr.mxu0 0.0
        %807 = vmatpush1.msra.mxu0 0.0
        %808 = vmatprep.subr.mxu0 0.0
        %809 = vmatpush1.msra.mxu0 0.0
        %810 = vmatprep.subr.mxu0 0.0
        %811 = vmatpush1.msra.mxu0 0.0
        %812 = vmatprep.subr.mxu0 0.0
        %813 = vmatpush1.msra.mxu0 0.0
        %814 = vmatprep.subr.mxu0 0.0
        %815 = vmatpush1.msra.mxu0 0.0
        %816 = vmatprep.subr.mxu0 0.0
        %817 = vmatpush1.msra.mxu0 0.0
        %818 = vmatprep.subr.mxu0 0.0
        %819 = vmatpush1.msra.mxu0 0.0
        %820 = vmatprep.subr.mxu0 0.0
        %821 = vmatpush1.msra.mxu0 0.0
        %822 = vmatprep.subr.mxu0 0.0
        %823 = vmatpush1.msra.mxu0 0.0
        %824 = vmatprep.subr.mxu0 0.0
        %825 = vmatpush1.msra.mxu0 0.0
        %826 = vmatprep.subr.mxu0 0.0
        %827 = vmatpush1.msra.mxu0 0.0
        %828 = vmatprep.mubr.f32.mxu0 0.0
        %829 = vmatmul.mubr.f32.gmra.mrb[0].mxu0 %v683
        %v830 = vpop.f32.mrb[0].mxu0
        %v831 = vadd.f32 %v762, %v830
        %v832 = vpop.f32.mrb[0].mxu0
        %833 = vdwg.mxu0
        %v834 = vld [vmem:[#allocation10] sm:$0xff]
        %v835 = vld [vmem:[#allocation10 + $0x8] sm:$0xff]
        %v836 = vld [vmem:[#allocation13] sm:$0x1]
        %v838 = vlaneseq
        %v839 = vshrl.u32 %v838, 7
        %v840 = vsub.s32 0, %v839
        %v841 = vrot.slane %v836, %v840
        %843 = vmatprep.subr.mxu0 0.0
        %844 = vmatpush1.msra.mxu0 %v834
        %845 = vmatprep.subr.mxu0 0.0
        %846 = vmatpush1.msra.mxu0 %v835
        %847 = vmatprep.subr.mxu0 0.0
        %848 = vmatpush1.msra.mxu0 0.0
        %849 = vmatprep.subr.mxu0 0.0
        %850 = vmatpush1.msra.mxu0 0.0
        %851 = vmatprep.subr.mxu0 0.0
        %852 = vmatpush1.msra.mxu0 0.0
        %853 = vmatprep.subr.mxu0 0.0
        %854 = vmatpush1.msra.mxu0 0.0
        %855 = vmatprep.subr.mxu0 0.0
        %856 = vmatpush1.msra.mxu0 0.0
        %857 = vmatprep.subr.mxu0 0.0
        %858 = vmatpush1.msra.mxu0 0.0
        %859 = vmatprep.subr.mxu0 0.0
        %860 = vmatpush1.msra.mxu0 0.0
        %861 = vmatprep.subr.mxu0 0.0
        %862 = vmatpush1.msra.mxu0 0.0
        %863 = vmatprep.subr.mxu0 0.0
        %864 = vmatpush1.msra.mxu0 0.0
        %865 = vmatprep.subr.mxu0 0.0
        %866 = vmatpush1.msra.mxu0 0.0
        %867 = vmatprep.subr.mxu0 0.0
        %868 = vmatpush1.msra.mxu0 0.0
        %869 = vmatprep.subr.mxu0 0.0
        %870 = vmatpush1.msra.mxu0 0.0
        %871 = vmatprep.subr.mxu0 0.0
        %872 = vmatpush1.msra.mxu0 0.0
        %873 = vmatprep.subr.mxu0 0.0
        %874 = vmatpush1.msra.mxu0 0.0
        %875 = vmatprep.subr.mxu0 0.0
        %876 = vmatpush1.msra.mxu0 0.0
        %877 = vmatprep.subr.mxu0 0.0
        %878 = vmatpush1.msra.mxu0 0.0
        %879 = vmatprep.subr.mxu0 0.0
        %880 = vmatpush1.msra.mxu0 0.0
        %881 = vmatprep.subr.mxu0 0.0
        %882 = vmatpush1.msra.mxu0 0.0
        %883 = vmatprep.subr.mxu0 0.0
        %884 = vmatpush1.msra.mxu0 0.0
        %885 = vmatprep.subr.mxu0 0.0
        %886 = vmatpush1.msra.mxu0 0.0
        %887 = vmatprep.subr.mxu0 0.0
        %888 = vmatpush1.msra.mxu0 0.0
        %889 = vmatprep.subr.mxu0 0.0
        %890 = vmatpush1.msra.mxu0 0.0
        %891 = vmatprep.subr.mxu0 0.0
        %892 = vmatpush1.msra.mxu0 0.0
        %893 = vmatprep.subr.mxu0 0.0
        %894 = vmatpush1.msra.mxu0 0.0
        %895 = vmatprep.subr.mxu0 0.0
        %896 = vmatpush1.msra.mxu0 0.0
        %897 = vmatprep.subr.mxu0 0.0
        %898 = vmatpush1.msra.mxu0 0.0
        %899 = vmatprep.subr.mxu0 0.0
        %900 = vmatpush1.msra.mxu0 0.0
        %901 = vmatprep.subr.mxu0 0.0
        %902 = vmatpush1.msra.mxu0 0.0
        %903 = vmatprep.subr.mxu0 0.0
        %904 = vmatpush1.msra.mxu0 0.0
        %905 = vmatprep.subr.mxu0 0.0
        %906 = vmatpush1.msra.mxu0 0.0
        %907 = vmatprep.mubr.f32.mxu0 0.0
        %908 = vmatmul.mubr.f32.gmra.mrb[0].mxu0 %v683
        %v909 = vpop.f32.mrb[0].mxu0
        %v910 = vadd.f32 %v841, %v909
        %v911 = vpop.f32.mrb[0].mxu0
        %912 = vdwg.mxu0
        %v913 = vld [vmem:[%s8] sm:$0xff]
        %v914 = vld [vmem:[%s8 + $0x8] sm:$0xff]
        %v915 = vmul.f32 %v752, 0.35355338
        %vm916 = vcmask 64512
        %v918 = vsel %vm916, %v915, 0
        %v921 = vsel %vm916, %v831, 0
        %923 = vmatprep.subr.mxu0 0.0
        %924 = vmatpush1.xpose.msra.mxu0 %v921
        %925 = vmatprep.subr.mxu0 0.0
        %926 = vmatpush1.xpose.msra.mxu0 0.0
        %927 = vmatprep.subr.mxu0 0.0
        %928 = vmatpush1.xpose.msra.mxu0 0.0
        %929 = vmatprep.subr.mxu0 0.0
        %930 = vmatpush1.xpose.msra.mxu0 0.0
        %931 = vmatprep.subr.mxu0 0.0
        %932 = vmatpush1.xpose.msra.mxu0 0.0
        %933 = vmatprep.subr.mxu0 0.0
        %934 = vmatpush1.xpose.msra.mxu0 0.0
        %935 = vmatprep.subr.mxu0 0.0
        %936 = vmatpush1.xpose.msra.mxu0 0.0
        %937 = vmatprep.subr.mxu0 0.0
        %938 = vmatpush1.xpose.msra.mxu0 0.0
        %939 = vmatprep.subr.mxu0 0.0
        %940 = vmatpush1.xpose.msra.mxu0 0.0
        %941 = vmatprep.subr.mxu0 0.0
        %942 = vmatpush1.xpose.msra.mxu0 0.0
        %943 = vmatprep.subr.mxu0 0.0
        %944 = vmatpush1.xpose.msra.mxu0 0.0
        %945 = vmatprep.subr.mxu0 0.0
        %946 = vmatpush1.xpose.msra.mxu0 0.0
        %947 = vmatprep.subr.mxu0 0.0
        %948 = vmatpush1.xpose.msra.mxu0 0.0
        %949 = vmatprep.subr.mxu0 0.0
        %950 = vmatpush1.xpose.msra.mxu0 0.0
        %951 = vmatprep.subr.mxu0 0.0
        %952 = vmatpush1.xpose.msra.mxu0 0.0
        %953 = vmatprep.subr.mxu0 0.0
        %954 = vmatpush1.xpose.msra.mxu0 0.0
        %955 = vmatprep.subr.mxu0 0.0
        %956 = vmatpush1.xpose.msra.mxu0 0.0
        %957 = vmatprep.subr.mxu0 0.0
        %958 = vmatpush1.xpose.msra.mxu0 0.0
        %959 = vmatprep.subr.mxu0 0.0
        %960 = vmatpush1.xpose.msra.mxu0 0.0
        %961 = vmatprep.subr.mxu0 0.0
        %962 = vmatpush1.xpose.msra.mxu0 0.0
        %963 = vmatprep.subr.mxu0 0.0
        %964 = vmatpush1.xpose.msra.mxu0 0.0
        %965 = vmatprep.subr.mxu0 0.0
        %966 = vmatpush1.xpose.msra.mxu0 0.0
        %967 = vmatprep.subr.mxu0 0.0
        %968 = vmatpush1.xpose.msra.mxu0 0.0
        %969 = vmatprep.subr.mxu0 0.0
        %970 = vmatpush1.xpose.msra.mxu0 0.0
        %971 = vmatprep.subr.mxu0 0.0
        %972 = vmatpush1.xpose.msra.mxu0 0.0
        %973 = vmatprep.subr.mxu0 0.0
        %974 = vmatpush1.xpose.msra.mxu0 0.0
        %975 = vmatprep.subr.mxu0 0.0
        %976 = vmatpush1.xpose.msra.mxu0 0.0
        %977 = vmatprep.subr.mxu0 0.0
        %978 = vmatpush1.xpose.msra.mxu0 0.0
        %979 = vmatprep.subr.mxu0 0.0
        %980 = vmatpush1.xpose.msra.mxu0 0.0
        %981 = vmatprep.subr.mxu0 0.0
        %982 = vmatpush1.xpose.msra.mxu0 0.0
        %983 = vmatprep.subr.mxu0 0.0
        %984 = vmatpush1.xpose.msra.mxu0 0.0
        %985 = vmatprep.subr.mxu0 0.0
        %986 = vmatpush1.xpose.msra.mxu0 0.0
        %987 = vmatprep.mubr.f32.mxu0 0.0
        %988 = vmatmul.mubr.f32.gmra.mrb[0].mxu0 %v918
        %v989 = vpop.f32.mrb[0].mxu0
        %v990 = vadd.f32 0.0, %v989
        %v991 = vpop.f32.mrb[0].mxu0
        %992 = vdwg.mxu0
        %v993 = vsel %vm916, %v990, -inf
        %994 = vmax.xlane.f32.xlu0 %v993
        %v995 = vpop.xlane.xlu0 %994
        %v996 = vsub.f32 %v990, %v995
        %v997 = vmul.f32 %v996, 1.442695
        %v998 = vpow.pop %v997
        %v999 = vsel %vm916, %v998, 0.0
        %1000 = vadd.xlane.f32.xlu0 %v999
        %v1001 = vpop.xlane.xlu0 %1000
        %v1002 = vrcp.pop %v1001
        %v1003 = vmul.f32 %v998, %v1002
        %v1005 = vsel %vm916, %v1003, 0
        %1007 = vmatprep.subr.mxu0 0.0
        %1008 = vmatpush1.msra.mxu0 %v910
        %1009 = vmatprep.subr.mxu0 0.0
        %1010 = vmatpush1.msra.mxu0 0.0
        %1011 = vmatprep.subr.mxu0 0.0
        %1012 = vmatpush1.msra.mxu0 0.0
        %1013 = vmatprep.subr.mxu0 0.0
        %1014 = vmatpush1.msra.mxu0 0.0
        %1015 = vmatprep.subr.mxu0 0.0
        %1016 = vmatpush1.msra.mxu0 0.0
        %1017 = vmatprep.subr.mxu0 0.0
        %1018 = vmatpush1.msra.mxu0 0.0
        %1019 = vmatprep.subr.mxu0 0.0
        %1020 = vmatpush1.msra.mxu0 0.0
        %1021 = vmatprep.subr.mxu0 0.0
        %1022 = vmatpush1.msra.mxu0 0.0
        %1023 = vmatprep.subr.mxu0 0.0
        %1024 = vmatpush1.msra.mxu0 0.0
        %1025 = vmatprep.subr.mxu0 0.0
        %1026 = vmatpush1.msra.mxu0 0.0
        %1027 = vmatprep.subr.mxu0 0.0
        %1028 = vmatpush1.msra.mxu0 0.0
        %1029 = vmatprep.subr.mxu0 0.0
        %1030 = vmatpush1.msra.mxu0 0.0
        %1031 = vmatprep.subr.mxu0 0.0
        %1032 = vmatpush1.msra.mxu0 0.0
        %1033 = vmatprep.subr.mxu0 0.0
        %1034 = vmatpush1.msra.mxu0 0.0
        %1035 = vmatprep.subr.mxu0 0.0
        %1036 = vmatpush1.msra.mxu0 0.0
        %1037 = vmatprep.subr.mxu0 0.0
        %1038 = vmatpush1.msra.mxu0 0.0
        %1039 = vmatprep.subr.mxu0 0.0
        %1040 = vmatpush1.msra.mxu0 0.0
        %1041 = vmatprep.subr.mxu0 0.0
        %1042 = vmatpush1.msra.mxu0 0.0
        %1043 = vmatprep.subr.mxu0 0.0
        %1044 = vmatpush1.msra.mxu0 0.0
        %1045 = vmatprep.subr.mxu0 0.0
        %1046 = vmatpush1.msra.mxu0 0.0
        %1047 = vmatprep.subr.mxu0 0.0
        %1048 = vmatpush1.msra.mxu0 0.0
        %1049 = vmatprep.subr.mxu0 0.0
        %1050 = vmatpush1.msra.mxu0 0.0
        %1051 = vmatprep.subr.mxu0 0.0
        %1052 = vmatpush1.msra.mxu0 0.0
        %1053 = vmatprep.subr.mxu0 0.0
        %1054 = vmatpush1.msra.mxu0 0.0
        %1055 = vmatprep.subr.mxu0 0.0
        %1056 = vmatpush1.msra.mxu0 0.0
        %1057 = vmatprep.subr.mxu0 0.0
        %1058 = vmatpush1.msra.mxu0 0.0
        %1059 = vmatprep.subr.mxu0 0.0
        %1060 = vmatpush1.msra.mxu0 0.0
        %1061 = vmatprep.subr.mxu0 0.0
        %1062 = vmatpush1.msra.mxu0 0.0
        %1063 = vmatprep.subr.mxu0 0.0
        %1064 = vmatpush1.msra.mxu0 0.0
        %1065 = vmatprep.subr.mxu0 0.0
        %1066 = vmatpush1.msra.mxu0 0.0
        %1067 = vmatprep.subr.mxu0 0.0
        %1068 = vmatpush1.msra.mxu0 0.0
        %1069 = vmatprep.subr.mxu0 0.0
        %1070 = vmatpush1.msra.mxu0 0.0
        %1071 = vmatprep.mubr.f32.mxu0 0.0
        %1072 = vmatmul.mubr.f32.gmra.mrb[0].mxu0 %v1005
        %v1073 = vpop.f32.mrb[0].mxu0
        %v1074 = vadd.f32 0.0, %v1073
        %v1075 = vpop.f32.mrb[0].mxu0
        %1076 = vdwg.mxu0
        %1077 = vrot.lane.b32.xlu0 %v915, 120
        %v1078 = vpop.permute.xlu0 %1077
        %1079 = vrot.lane.b32.xlu0 %v831, 120
        %v1080 = vpop.permute.xlu0 %1079
        %v1081 = vsel %vm916, %v1078, 0
        %v1083 = vsel %vm916, %v1080, 0
        %1085 = vmatprep.subr.mxu0 0.0
        %1086 = vmatpush1.xpose.msra.mxu0 %v1083
        %1087 = vmatprep.subr.mxu0 0.0
        %1088 = vmatpush1.xpose.msra.mxu0 0.0
        %1089 = vmatprep.subr.mxu0 0.0
        %1090 = vmatpush1.xpose.msra.mxu0 0.0
        %1091 = vmatprep.subr.mxu0 0.0
        %1092 = vmatpush1.xpose.msra.mxu0 0.0
        %1093 = vmatprep.subr.mxu0 0.0
        %1094 = vmatpush1.xpose.msra.mxu0 0.0
        %1095 = vmatprep.subr.mxu0 0.0
        %1096 = vmatpush1.xpose.msra.mxu0 0.0
        %1097 = vmatprep.subr.mxu0 0.0
        %1098 = vmatpush1.xpose.msra.mxu0 0.0
        %1099 = vmatprep.subr.mxu0 0.0
        %1100 = vmatpush1.xpose.msra.mxu0 0.0
        %1101 = vmatprep.subr.mxu0 0.0
        %1102 = vmatpush1.xpose.msra.mxu0 0.0
        %1103 = vmatprep.subr.mxu0 0.0
        %1104 = vmatpush1.xpose.msra.mxu0 0.0
        %1105 = vmatprep.subr.mxu0 0.0
        %1106 = vmatpush1.xpose.msra.mxu0 0.0
        %1107 = vmatprep.subr.mxu0 0.0
        %1108 = vmatpush1.xpose.msra.mxu0 0.0
        %1109 = vmatprep.subr.mxu0 0.0
        %1110 = vmatpush1.xpose.msra.mxu0 0.0
        %1111 = vmatprep.subr.mxu0 0.0
        %1112 = vmatpush1.xpose.msra.mxu0 0.0
        %1113 = vmatprep.subr.mxu0 0.0
        %1114 = vmatpush1.xpose.msra.mxu0 0.0
        %1115 = vmatprep.subr.mxu0 0.0
        %1116 = vmatpush1.xpose.msra.mxu0 0.0
        %1117 = vmatprep.subr.mxu0 0.0
        %1118 = vmatpush1.xpose.msra.mxu0 0.0
        %1119 = vmatprep.subr.mxu0 0.0
        %1120 = vmatpush1.xpose.msra.mxu0 0.0
        %1121 = vmatprep.subr.mxu0 0.0
        %1122 = vmatpush1.xpose.msra.mxu0 0.0
        %1123 = vmatprep.subr.mxu0 0.0
        %1124 = vmatpush1.xpose.msra.mxu0 0.0
        %1125 = vmatprep.subr.mxu0 0.0
        %1126 = vmatpush1.xpose.msra.mxu0 0.0
        %1127 = vmatprep.subr.mxu0 0.0
        %1128 = vmatpush1.xpose.msra.mxu0 0.0
        %1129 = vmatprep.subr.mxu0 0.0
        %1130 = vmatpush1.xpose.msra.mxu0 0.0
        %1131 = vmatprep.subr.mxu0 0.0
        %1132 = vmatpush1.xpose.msra.mxu0 0.0
        %1133 = vmatprep.subr.mxu0 0.0
        %1134 = vmatpush1.xpose.msra.mxu0 0.0
        %1135 = vmatprep.subr.mxu0 0.0
        %1136 = vmatpush1.xpose.msra.mxu0 0.0
        %1137 = vmatprep.subr.mxu0 0.0
        %1138 = vmatpush1.xpose.msra.mxu0 0.0
        %1139 = vmatprep.subr.mxu0 0.0
        %1140 = vmatpush1.xpose.msra.mxu0 0.0
        %1141 = vmatprep.subr.mxu0 0.0
        %1142 = vmatpush1.xpose.msra.mxu0 0.0
        %1143 = vmatprep.subr.mxu0 0.0
        %1144 = vmatpush1.xpose.msra.mxu0 0.0
        %1145 = vmatprep.subr.mxu0 0.0
        %1146 = vmatpush1.xpose.msra.mxu0 0.0
        %1147 = vmatprep.subr.mxu0 0.0
        %1148 = vmatpush1.xpose.msra.mxu0 0.0
        %1149 = vmatprep.mubr.f32.mxu0 0.0
        %1150 = vmatmul.mubr.f32.gmra.mrb[0].mxu0 %v1081
        %v1151 = vpop.f32.mrb[0].mxu0
        %v1152 = vadd.f32 0.0, %v1151
        %v1153 = vpop.f32.mrb[0].mxu0
        %1154 = vdwg.mxu0
        %v1155 = vsel %vm916, %v1152, -inf
        %1156 = vmax.xlane.f32.xlu0 %v1155
        %v1157 = vpop.xlane.xlu0 %1156
        %v1158 = vsub.f32 %v1152, %v1157
        %v1159 = vmul.f32 %v1158, 1.442695
        %v1160 = vpow.pop %v1159
        %v1161 = vsel %vm916, %v1160, 0.0
        %1162 = vadd.xlane.f32.xlu0 %v1161
        %v1163 = vpop.xlane.xlu0 %1162
        %v1164 = vrcp.pop %v1163
        %v1165 = vmul.f32 %v1160, %v1164
        %1167 = vrot.lane.b32.xlu0 %v910, 120
        %v1168 = vpop.permute.xlu0 %1167
        %v1171 = vsel %vm916, %v1165, 0
        %1173 = vmatprep.subr.mxu0 0.0
        %1174 = vmatpush1.msra.mxu0 %v1168
        %1175 = vmatprep.subr.mxu0 0.0
        %1176 = vmatpush1.msra.mxu0 0.0
        %1177 = vmatprep.subr.mxu0 0.0
        %1178 = vmatpush1.msra.mxu0 0.0
        %1179 = vmatprep.subr.mxu0 0.0
        %1180 = vmatpush1.msra.mxu0 0.0
        %1181 = vmatprep.subr.mxu0 0.0
        %1182 = vmatpush1.msra.mxu0 0.0
        %1183 = vmatprep.subr.mxu0 0.0
        %1184 = vmatpush1.msra.mxu0 0.0
        %1185 = vmatprep.subr.mxu0 0.0
        %1186 = vmatpush1.msra.mxu0 0.0
        %1187 = vmatprep.subr.mxu0 0.0
        %1188 = vmatpush1.msra.mxu0 0.0
        %1189 = vmatprep.subr.mxu0 0.0
        %1190 = vmatpush1.msra.mxu0 0.0
        %1191 = vmatprep.subr.mxu0 0.0
        %1192 = vmatpush1.msra.mxu0 0.0
        %1193 = vmatprep.subr.mxu0 0.0
        %1194 = vmatpush1.msra.mxu0 0.0
        %1195 = vmatprep.subr.mxu0 0.0
        %1196 = vmatpush1.msra.mxu0 0.0
        %1197 = vmatprep.subr.mxu0 0.0
        %1198 = vmatpush1.msra.mxu0 0.0
        %1199 = vmatprep.subr.mxu0 0.0
        %1200 = vmatpush1.msra.mxu0 0.0
        %1201 = vmatprep.subr.mxu0 0.0
        %1202 = vmatpush1.msra.mxu0 0.0
        %1203 = vmatprep.subr.mxu0 0.0
        %1204 = vmatpush1.msra.mxu0 0.0
        %1205 = vmatprep.subr.mxu0 0.0
        %1206 = vmatpush1.msra.mxu0 0.0
        %1207 = vmatprep.subr.mxu0 0.0
        %1208 = vmatpush1.msra.mxu0 0.0
        %1209 = vmatprep.subr.mxu0 0.0
        %1210 = vmatpush1.msra.mxu0 0.0
        %1211 = vmatprep.subr.mxu0 0.0
        %1212 = vmatpush1.msra.mxu0 0.0
        %1213 = vmatprep.subr.mxu0 0.0
        %1214 = vmatpush1.msra.mxu0 0.0
        %1215 = vmatprep.subr.mxu0 0.0
        %1216 = vmatpush1.msra.mxu0 0.0
        %1217 = vmatprep.subr.mxu0 0.0
        %1218 = vmatpush1.msra.mxu0 0.0
        %1219 = vmatprep.subr.mxu0 0.0
        %1220 = vmatpush1.msra.mxu0 0.0
        %1221 = vmatprep.subr.mxu0 0.0
        %1222 = vmatpush1.msra.mxu0 0.0
        %1223 = vmatprep.subr.mxu0 0.0
        %1224 = vmatpush1.msra.mxu0 0.0
        %1225 = vmatprep.subr.mxu0 0.0
        %1226 = vmatpush1.msra.mxu0 0.0
        %1227 = vmatprep.subr.mxu0 0.0
        %1228 = vmatpush1.msra.mxu0 0.0
        %1229 = vmatprep.subr.mxu0 0.0
        %1230 = vmatpush1.msra.mxu0 0.0
        %1231 = vmatprep.subr.mxu0 0.0
        %1232 = vmatpush1.msra.mxu0 0.0
        %1233 = vmatprep.subr.mxu0 0.0
        %1234 = vmatpush1.msra.mxu0 0.0
        %1235 = vmatprep.subr.mxu0 0.0
        %1236 = vmatpush1.msra.mxu0 0.0
        %1237 = vmatprep.mubr.f32.mxu0 0.0
        %1238 = vmatmul.mubr.f32.gmra.mrb[0].mxu0 %v1171
        %v1239 = vpop.f32.mrb[0].mxu0
        %v1240 = vadd.f32 0.0, %v1239
        %v1241 = vpop.f32.mrb[0].mxu0
        %1242 = vdwg.mxu0
        %v1244 = vsel %vm916, %v1240, 0
        %1246 = vmatprep.subr.mxu0 0.0
        %1247 = vmatpush1.msra.mxu0 %v914
        %1248 = vmatprep.subr.mxu0 0.0
        %1249 = vmatpush1.msra.mxu0 0.0
        %1250 = vmatprep.subr.mxu0 0.0
        %1251 = vmatpush1.msra.mxu0 0.0
        %1252 = vmatprep.subr.mxu0 0.0
        %1253 = vmatpush1.msra.mxu0 0.0
        %1254 = vmatprep.subr.mxu0 0.0
        %1255 = vmatpush1.msra.mxu0 0.0
        %1256 = vmatprep.subr.mxu0 0.0
        %1257 = vmatpush1.msra.mxu0 0.0
        %1258 = vmatprep.subr.mxu0 0.0
        %1259 = vmatpush1.msra.mxu0 0.0
        %1260 = vmatprep.subr.mxu0 0.0
        %1261 = vmatpush1.msra.mxu0 0.0
        %1262 = vmatprep.subr.mxu0 0.0
        %1263 = vmatpush1.msra.mxu0 0.0
        %1264 = vmatprep.subr.mxu0 0.0
        %1265 = vmatpush1.msra.mxu0 0.0
        %1266 = vmatprep.subr.mxu0 0.0
        %1267 = vmatpush1.msra.mxu0 0.0
        %1268 = vmatprep.subr.mxu0 0.0
        %1269 = vmatpush1.msra.mxu0 0.0
        %1270 = vmatprep.subr.mxu0 0.0
        %1271 = vmatpush1.msra.mxu0 0.0
        %1272 = vmatprep.subr.mxu0 0.0
        %1273 = vmatpush1.msra.mxu0 0.0
        %1274 = vmatprep.subr.mxu0 0.0
        %1275 = vmatpush1.msra.mxu0 0.0
        %1276 = vmatprep.subr.mxu0 0.0
        %1277 = vmatpush1.msra.mxu0 0.0
        %1278 = vmatprep.subr.mxu0 0.0
        %1279 = vmatpush1.msra.mxu0 0.0
        %1280 = vmatprep.subr.mxu0 0.0
        %1281 = vmatpush1.msra.mxu0 0.0
        %1282 = vmatprep.subr.mxu0 0.0
        %1283 = vmatpush1.msra.mxu0 0.0
        %1284 = vmatprep.subr.mxu0 0.0
        %1285 = vmatpush1.msra.mxu0 0.0
        %1286 = vmatprep.subr.mxu0 0.0
        %1287 = vmatpush1.msra.mxu0 0.0
        %1288 = vmatprep.subr.mxu0 0.0
        %1289 = vmatpush1.msra.mxu0 0.0
        %1290 = vmatprep.subr.mxu0 0.0
        %1291 = vmatpush1.msra.mxu0 0.0
        %1292 = vmatprep.subr.mxu0 0.0
        %1293 = vmatpush1.msra.mxu0 0.0
        %1294 = vmatprep.subr.mxu0 0.0
        %1295 = vmatpush1.msra.mxu0 0.0
        %1296 = vmatprep.subr.mxu0 0.0
        %1297 = vmatpush1.msra.mxu0 0.0
        %1298 = vmatprep.subr.mxu0 0.0
        %1299 = vmatpush1.msra.mxu0 0.0
        %1300 = vmatprep.subr.mxu0 0.0
        %1301 = vmatpush1.msra.mxu0 0.0
        %1302 = vmatprep.subr.mxu0 0.0
        %1303 = vmatpush1.msra.mxu0 0.0
        %1304 = vmatprep.subr.mxu0 0.0
        %1305 = vmatpush1.msra.mxu0 0.0
        %1306 = vmatprep.subr.mxu0 0.0
        %1307 = vmatpush1.msra.mxu0 0.0
        %1308 = vmatprep.subr.mxu0 0.0
        %1309 = vmatpush1.msra.mxu0 0.0
        %1310 = vmatprep.mubr.f32.mxu0 0.0
        %1311 = vmatmul.mubr.f32.gmra.mrb[0].mxu0 %v1244
        %v1312 = vpop.f32.mrb[0].mxu0
        %v1313 = vadd.f32 0.0, %v1312
        %v1314 = vpop.f32.mrb[0].mxu0
        %1315 = vdwg.mxu0
        %v1317 = vsel %vm916, %v1074, 0
        %1319 = vmatprep.subr.mxu0 0.0
        %1320 = vmatpush1.msra.mxu0 %v913
        %1321 = vmatprep.subr.mxu0 0.0
        %1322 = vmatpush1.msra.mxu0 0.0
        %1323 = vmatprep.subr.mxu0 0.0
        %1324 = vmatpush1.msra.mxu0 0.0
        %1325 = vmatprep.subr.mxu0 0.0
        %1326 = vmatpush1.msra.mxu0 0.0
        %1327 = vmatprep.subr.mxu0 0.0
        %1328 = vmatpush1.msra.mxu0 0.0
        %1329 = vmatprep.subr.mxu0 0.0
        %1330 = vmatpush1.msra.mxu0 0.0
        %1331 = vmatprep.subr.mxu0 0.0
        %1332 = vmatpush1.msra.mxu0 0.0
        %1333 = vmatprep.subr.mxu0 0.0
        %1334 = vmatpush1.msra.mxu0 0.0
        %1335 = vmatprep.subr.mxu0 0.0
        %1336 = vmatpush1.msra.mxu0 0.0
        %1337 = vmatprep.subr.mxu0 0.0
        %1338 = vmatpush1.msra.mxu0 0.0
        %1339 = vmatprep.subr.mxu0 0.0
        %1340 = vmatpush1.msra.mxu0 0.0
        %1341 = vmatprep.subr.mxu0 0.0
        %1342 = vmatpush1.msra.mxu0 0.0
        %1343 = vmatprep.subr.mxu0 0.0
        %1344 = vmatpush1.msra.mxu0 0.0
        %1345 = vmatprep.subr.mxu0 0.0
        %1346 = vmatpush1.msra.mxu0 0.0
        %1347 = vmatprep.subr.mxu0 0.0
        %1348 = vmatpush1.msra.mxu0 0.0
        %1349 = vmatprep.subr.mxu0 0.0
        %1350 = vmatpush1.msra.mxu0 0.0
        %1351 = vmatprep.subr.mxu0 0.0
        %1352 = vmatpush1.msra.mxu0 0.0
        %1353 = vmatprep.subr.mxu0 0.0
        %1354 = vmatpush1.msra.mxu0 0.0
        %1355 = vmatprep.subr.mxu0 0.0
        %1356 = vmatpush1.msra.mxu0 0.0
        %1357 = vmatprep.subr.mxu0 0.0
        %1358 = vmatpush1.msra.mxu0 0.0
        %1359 = vmatprep.subr.mxu0 0.0
        %1360 = vmatpush1.msra.mxu0 0.0
        %1361 = vmatprep.subr.mxu0 0.0
        %1362 = vmatpush1.msra.mxu0 0.0
        %1363 = vmatprep.subr.mxu0 0.0
        %1364 = vmatpush1.msra.mxu0 0.0
        %1365 = vmatprep.subr.mxu0 0.0
        %1366 = vmatpush1.msra.mxu0 0.0
        %1367 = vmatprep.subr.mxu0 0.0
        %1368 = vmatpush1.msra.mxu0 0.0
        %1369 = vmatprep.subr.mxu0 0.0
        %1370 = vmatpush1.msra.mxu0 0.0
        %1371 = vmatprep.subr.mxu0 0.0
        %1372 = vmatpush1.msra.mxu0 0.0
        %1373 = vmatprep.subr.mxu0 0.0
        %1374 = vmatpush1.msra.mxu0 0.0
        %1375 = vmatprep.subr.mxu0 0.0
        %1376 = vmatpush1.msra.mxu0 0.0
        %1377 = vmatprep.subr.mxu0 0.0
        %1378 = vmatpush1.msra.mxu0 0.0
        %1379 = vmatprep.subr.mxu0 0.0
        %1380 = vmatpush1.msra.mxu0 0.0
        %1381 = vmatprep.subr.mxu0 0.0
        %1382 = vmatpush1.msra.mxu0 0.0
        %1383 = vmatprep.mubr.f32.mxu0 0.0
        %1384 = vmatmul.mubr.f32.gmra.mrb[0].mxu0 %v1317
        %v1385 = vpop.f32.mrb[0].mxu0
        %v1386 = vadd.f32 %v1313, %v1385
        %v1387 = vpop.f32.mrb[0].mxu0
        %1388 = vdwg.mxu0
        %v1389 = vld [vmem:[#allocation14] sm:$0x1]
        %v1391 = vlaneseq
        %v1392 = vshrl.u32 %v1391, 7
        %v1393 = vsub.s32 0, %v1392
        %v1394 = vrot.slane %v1389, %v1393
        %v1396 = vadd.f32 %v1386, %v1394
        %v1397 = vld [vmem:[#allocation16] sm:$0x1]
        %v1398 = vld [vmem:[#allocation17] sm:$0x1]
        %v1399 = vadd.f32 %v671, %v1396
        %v1400 = vsel %vm681, %v1399, 0.0
        %1401 = vadd.xlane.f32.xlu0 %v1400
        %v1402 = vpop.xlane.xlu0 %1401
        %v1403 = vrcp.pop 16.0
        %v1404 = vmul.f32 %v1402, %v1403
        %v1405 = vsub.f32 %v1399, %v1404
        %v1406 = vmul.f32 %v1405, %v1405
        %v1407 = vsel %vm681, %v1406, 0.0
        %1408 = vadd.xlane.f32.xlu0 %v1407
        %v1409 = vpop.xlane.xlu0 %1408
        %v1410 = vmul.f32 %v1409, %v1403
        %v1411 = vadd.f32 %v1410, 1e-05
        %v1412 = vrsqrt.pop %v1411
        %v1413 = vmul.f32 %v1405, %v1412
        %v1415 = vlaneseq
        %v1416 = vshrl.u32 %v1415, 7
        %v1417 = vsub.s32 0, %v1416
        %v1418 = vrot.slane %v1397, %v1417
        %v1420 = vmul.f32 %v1413, %v1418
        %v1422 = vlaneseq
        %v1423 = vshrl.u32 %v1422, 7
        %v1424 = vsub.s32 0, %v1423
        %v1425 = vrot.slane %v1398, %v1424
        %v1427 = vadd.f32 %v1420, %v1425
        %v1428 = vld [vmem:[%s12] sm:$0xff]
        %v1429 = vld [vmem:[%s12 + $0x8] sm:$0xff]
        %v1430 = vld [vmem:[#allocation19] sm:$0x1]
        %v1432 = vlaneseq
        %v1433 = vshrl.u32 %v1432, 7
        %v1434 = vsub.s32 0, %v1433
        %v1435 = vrot.slane %v1430, %v1434
        %v1438 = vsel %vm681, %v1427, 0
        %1440 = vmatprep.subr.mxu0 0.0
        %1441 = vmatpush1.msra.mxu0 %v1428
        %1442 = vmatprep.subr.mxu0 0.0
        %1443 = vmatpush1.msra.mxu0 %v1429
        %1444 = vmatprep.subr.mxu0 0.0
        %1445 = vmatpush1.msra.mxu0 0.0
        %1446 = vmatprep.subr.mxu0 0.0
        %1447 = vmatpush1.msra.mxu0 0.0
        %1448 = vmatprep.subr.mxu0 0.0
        %1449 = vmatpush1.msra.mxu0 0.0
        %1450 = vmatprep.subr.mxu0 0.0
        %1451 = vmatpush1.msra.mxu0 0.0
        %1452 = vmatprep.subr.mxu0 0.0
        %1453 = vmatpush1.msra.mxu0 0.0
        %1454 = vmatprep.subr.mxu0 0.0
        %1455 = vmatpush1.msra.mxu0 0.0
        %1456 = vmatprep.subr.mxu0 0.0
        %1457 = vmatpush1.msra.mxu0 0.0
        %1458 = vmatprep.subr.mxu0 0.0
        %1459 = vmatpush1.msra.mxu0 0.0
        %1460 = vmatprep.subr.mxu0 0.0
        %1461 = vmatpush1.msra.mxu0 0.0
        %1462 = vmatprep.subr.mxu0 0.0
        %1463 = vmatpush1.msra.mxu0 0.0
        %1464 = vmatprep.subr.mxu0 0.0
        %1465 = vmatpush1.msra.mxu0 0.0
        %1466 = vmatprep.subr.mxu0 0.0
        %1467 = vmatpush1.msra.mxu0 0.0
        %1468 = vmatprep.subr.mxu0 0.0
        %1469 = vmatpush1.msra.mxu0 0.0
        %1470 = vmatprep.subr.mxu0 0.0
        %1471 = vmatpush1.msra.mxu0 0.0
        %1472 = vmatprep.subr.mxu0 0.0
        %1473 = vmatpush1.msra.mxu0 0.0
        %1474 = vmatprep.subr.mxu0 0.0
        %1475 = vmatpush1.msra.mxu0 0.0
        %1476 = vmatprep.subr.mxu0 0.0
        %1477 = vmatpush1.msra.mxu0 0.0
        %1478 = vmatprep.subr.mxu0 0.0
        %1479 = vmatpush1.msra.mxu0 0.0
        %1480 = vmatprep.subr.mxu0 0.0
        %1481 = vmatpush1.msra.mxu0 0.0
        %1482 = vmatprep.subr.mxu0 0.0
        %1483 = vmatpush1.msra.mxu0 0.0
        %1484 = vmatprep.subr.mxu0 0.0
        %1485 = vmatpush1.msra.mxu0 0.0
        %1486 = vmatprep.subr.mxu0 0.0
        %1487 = vmatpush1.msra.mxu0 0.0
        %1488 = vmatprep.subr.mxu0 0.0
        %1489 = vmatpush1.msra.mxu0 0.0
        %1490 = vmatprep.subr.mxu0 0.0
        %1491 = vmatpush1.msra.mxu0 0.0
        %1492 = vmatprep.subr.mxu0 0.0
        %1493 = vmatpush1.msra.mxu0 0.0
        %1494 = vmatprep.subr.mxu0 0.0
        %1495 = vmatpush1.msra.mxu0 0.0
        %1496 = vmatprep.subr.mxu0 0.0
        %1497 = vmatpush1.msra.mxu0 0.0
        %1498 = vmatprep.subr.mxu0 0.0
        %1499 = vmatpush1.msra.mxu0 0.0
        %1500 = vmatprep.subr.mxu0 0.0
        %1501 = vmatpush1.msra.mxu0 0.0
        %1502 = vmatprep.subr.mxu0 0.0
        %1503 = vmatpush1.msra.mxu0 0.0
        %1504 = vmatprep.mubr.f32.mxu0 0.0
        %1505 = vmatmul.mubr.f32.gmra.mrb[0].mxu0 %v1438
        %v1506 = vpop.f32.mrb[0].mxu0
        %v1507 = vadd.f32 %v1435, %v1506
        %v1508 = vpop.f32.mrb[0].mxu0
        %1509 = vdwg.mxu0
        %v1510 = vld [vmem:[%s14] sm:$0xff]
        %v1511 = vld [vmem:[%s14 + $0x8] sm:$0xff]
        %v1512 = vld [vmem:[%s15] sm:$0x1]
        %v1514 = vlaneseq
        %v1515 = vshrl.u32 %v1514, 7
        %v1516 = vsub.s32 0, %v1515
        %v1517 = vrot.slane %v1512, %v1516
        %v1520 = vsel %vm681, %v1507, 0
        %1522 = vmatprep.subr.mxu0 0.0
        %1523 = vmatpush1.msra.mxu0 %v1510
        %1524 = vmatprep.subr.mxu0 0.0
        %1525 = vmatpush1.msra.mxu0 %v1511
        %1526 = vmatprep.subr.mxu0 0.0
        %1527 = vmatpush1.msra.mxu0 0.0
        %1528 = vmatprep.subr.mxu0 0.0
        %1529 = vmatpush1.msra.mxu0 0.0
        %1530 = vmatprep.subr.mxu0 0.0
        %1531 = vmatpush1.msra.mxu0 0.0
        %1532 = vmatprep.subr.mxu0 0.0
        %1533 = vmatpush1.msra.mxu0 0.0
        %1534 = vmatprep.subr.mxu0 0.0
        %1535 = vmatpush1.msra.mxu0 0.0
        %1536 = vmatprep.subr.mxu0 0.0
        %1537 = vmatpush1.msra.mxu0 0.0
        %1538 = vmatprep.subr.mxu0 0.0
        %1539 = vmatpush1.msra.mxu0 0.0
        %1540 = vmatprep.subr.mxu0 0.0
        %1541 = vmatpush1.msra.mxu0 0.0
        %1542 = vmatprep.subr.mxu0 0.0
        %1543 = vmatpush1.msra.mxu0 0.0
        %1544 = vmatprep.subr.mxu0 0.0
        %1545 = vmatpush1.msra.mxu0 0.0
        %1546 = vmatprep.subr.mxu0 0.0
        %1547 = vmatpush1.msra.mxu0 0.0
        %1548 = vmatprep.subr.mxu0 0.0
        %1549 = vmatpush1.msra.mxu0 0.0
        %1550 = vmatprep.subr.mxu0 0.0
        %1551 = vmatpush1.msra.mxu0 0.0
        %1552 = vmatprep.subr.mxu0 0.0
        %1553 = vmatpush1.msra.mxu0 0.0
        %1554 = vmatprep.subr.mxu0 0.0
        %1555 = vmatpush1.msra.mxu0 0.0
        %1556 = vmatprep.subr.mxu0 0.0
        %1557 = vmatpush1.msra.mxu0 0.0
        %1558 = vmatprep.subr.mxu0 0.0
        %1559 = vmatpush1.msra.mxu0 0.0
        %1560 = vmatprep.subr.mxu0 0.0
        %1561 = vmatpush1.msra.mxu0 0.0
        %1562 = vmatprep.subr.mxu0 0.0
        %1563 = vmatpush1.msra.mxu0 0.0
        %1564 = vmatprep.subr.mxu0 0.0
        %1565 = vmatpush1.msra.mxu0 0.0
        %1566 = vmatprep.subr.mxu0 0.0
        %1567 = vmatpush1.msra.mxu0 0.0
        %1568 = vmatprep.subr.mxu0 0.0
        %1569 = vmatpush1.msra.mxu0 0.0
        %1570 = vmatprep.subr.mxu0 0.0
        %1571 = vmatpush1.msra.mxu0 0.0
        %1572 = vmatprep.subr.mxu0 0.0
        %1573 = vmatpush1.msra.mxu0 0.0
        %1574 = vmatprep.subr.mxu0 0.0
        %1575 = vmatpush1.msra.mxu0 0.0
        %1576 = vmatprep.subr.mxu0 0.0
        %1577 = vmatpush1.msra.mxu0 0.0
        %1578 = vmatprep.subr.mxu0 0.0
        %1579 = vmatpush1.msra.mxu0 0.0
        %1580 = vmatprep.subr.mxu0 0.0
        %1581 = vmatpush1.msra.mxu0 0.0
        %1582 = vmatprep.subr.mxu0 0.0
        %1583 = vmatpush1.msra.mxu0 0.0
        %1584 = vmatprep.subr.mxu0 0.0
        %1585 = vmatpush1.msra.mxu0 0.0
        %1586 = vmatprep.mubr.f32.mxu0 0.0
        %1587 = vmatmul.mubr.f32.gmra.mrb[0].mxu0 %v1520
        %v1588 = vpop.f32.mrb[0].mxu0
        %v1589 = vadd.f32 %v1517, %v1588
        %v1590 = vpop.f32.mrb[0].mxu0
        %1591 = vdwg.mxu0
        %v1592 = vadd.f32 %v1427, %v1589
        %v1593 = vsel %vm681, %v1592, 0.0
        %1594 = vadd.xlane.f32.xlu0 %v1593
        %v1595 = vpop.xlane.xlu0 %1594
        %v1596 = vmul.f32 %v1595, %v1403
        %v1597 = vsub.f32 %v1592, %v1596
        %v1598 = vmul.f32 %v1597, %v1597
        %v1599 = vsel %vm681, %v1598, 0.0
        %1600 = vadd.xlane.f32.xlu0 %v1599
        %v1601 = vpop.xlane.xlu0 %1600
        %v1602 = vmul.f32 %v1601, %v1403
        %v1603 = vadd.f32 %v1602, 1e-05
        %v1604 = vrsqrt.pop %v1603
        %v1605 = vmul.f32 %v1597, %v1604
        %v1606 = vmul.f32 %v1605, %v1418
        %v1607 = vadd.f32 %v1606, %v1425
        %1608 = vst.msk [vmem:[%s667] sm:$0xff] %vm681, %v1607
        %s1609 = sand.u32 %s387, 1
        %s1610 = scalar_lea.sflag [#allocation4], %s1609
        %s1611 = sand.u32 %s387, 1
        %s1612 = smul.addr %s1611, 8
        %s1613 = scalar_lea.vmem [#allocation20], %s1612
        // Predicated region
        $region129: #{tpu_custom_call.1} parent=83 // pred_check
          %p1614 = pneg %p397
        $region130: #{tpu_custom_call.1} parent=83 // pred_check_branch
          %1616 = sbr.rel (%p1614) target = $region132
        $region131: #{tpu_custom_call.1} parent=83 // pred_region
          %s1618 = ssub.s32 128, 128
          %1619 = vsyncadd %s1610, %s1618
          %s1620 = smul.addr %s38, 128
          %s1621 = scalar_lea.hbm %s16, %s1620
          %s1623 = sshll.u32 %s1613, 4
          %s1624 = int_to_ptr.vmem [resolvable:$true] %s1623
          %1626 = dma.vmem_to_hbm [thread:$0]  %s1624, 128, %s1621, %s1610
        $region132: #{tpu_custom_call.1} parent=83 // pred_fallthru
          _
      $region84: #{tpu_custom_call.1} parent=5 // pred_fallthru
        _
      %p1627 = scmp.le.s32.totalorder 2, %s33
      // Predicated region
      $region133: #{tpu_custom_call.1} parent=5 // pred_check
        %p1628 = pneg %p1627
      $region134: #{tpu_custom_call.1} parent=5 // pred_check_branch
        %1630 = sbr.rel (%p1628) target = $region136
      $region135: #{tpu_custom_call.1} parent=5 // pred_region
        %s1631 = ssub.s32 %s33, 2
        // Predicated region
        $region137: #{tpu_custom_call.1} parent=135 // pred_check
          %p1632 = pneg %p403
        $region138: #{tpu_custom_call.1} parent=135 // pred_check_branch
          %1634 = sbr.rel (%p1632) target = $region140
        $region139: #{tpu_custom_call.1} parent=135 // pred_region
          %s1635 = sand.u32 %s388, 1
          %s1636 = scalar_lea.sflag [#allocation4], %s1635
          %s1637 = sand.u32 %s388, 1
          %s1638 = smul.addr %s1637, 8
          %s1639 = scalar_lea.vmem [#allocation20], %s1638
          %1640 = dma.done %s1636, 128
        $region140: #{tpu_custom_call.1} parent=135 // pred_fallthru
          _
      $region136: #{tpu_custom_call.1} parent=5 // pred_fallthru
        _
    $region6: #{tpu_custom_call.1} parent=1 // loop_footer
      %s37 = sadd.s32 1, %s33
    $region7: #{tpu_custom_call.1} parent=1 // loop_footer_branch
      %32 = sbr.rel target = $region3
    $region8: #{tpu_custom_call.1} parent=1 // loop_exit
      _
    %1641 = vsyncpa [#allocation3], 1
    %s1642 = scalar_lea.sflag [#allocation3], 1
    %1643 = vsyncpa %s1642, 1
    %1644 = vsyncpa [#allocation6], 1
    %1645 = vsyncpa [#allocation9], 1
    %1646 = vsyncpa [#allocation12], 1
    %1647 = vsyncpa [#allocation15], 1
    %1648 = vsyncpa [#allocation18], 1
    %1649 = vsyncpa [#allocation4], 1
    %s1650 = scalar_lea.sflag [#allocation4], 1
    %1651 = vsyncpa %s1650, 1

</llo_original>
